<compile_context>
chip_gen: v5e
topology: v5e:2x2
jax: 0.10.0
libtpu: 0.0.40
codegen_flags: <defaults>
</compile_context>

<pallas_src>
import jax
import jax.numpy as jnp
from jax.experimental import pallas as pl
from jax.experimental.pallas import tpu as pltpu

IN_F = 784           # input features (28*28)
HID_F = 400          # true hidden features
HID_PAD = 512        # 4 * 128 (lane-aligned hidden)
MAX_TILE_B = 1024    # rows per grid step cap


def _round_up(v, m):
    return ((v + m - 1) // m) * m


def _choose_tile_b(batch):
    """Adaptive batch tile: tiny batches -> one small tile; otherwise aim for
    >= 2 tiles (v7x has 2 TensorCores sharded over the 'parallel' axis),
    capped at MAX_TILE_B to amortize per-step overhead."""
    if batch <= 16:
        return _round_up(max(batch, 1), 8)
    return min(MAX_TILE_B, _round_up(pl.cdiv(batch, 2), 8))


def discriminator_kernel(x_ref, w1_ref, b1_ref, w2_ref, b2_ref, o_ref):
    # Cast f32 x tile -> bf16 in-kernel (hides under the MXU; avoids a
    # separate pad/cast HBM pass in the wrapper).
    x = x_ref[...].astype(jnp.bfloat16)                         # (tile_b, 784)
    # fc1 on the MXU with f32 accumulation.
    h = jnp.dot(x, w1_ref[...], preferred_element_type=jnp.float32)  # (tile_b, 512)
    # Bias + ReLU in f32 (padded hidden cols have zero weight & bias -> stay 0).
    h = jnp.maximum(h + b1_ref[...], 0.0)
    # fc2 as a tiny N=1 MXU matmul instead of VPU mul + XLU lane reduce.
    z = jnp.dot(h.astype(jnp.bfloat16), w2_ref[...],
                preferred_element_type=jnp.float32)             # (tile_b, 1)
    z = z + b2_ref[0, 0]
    # Sigmoid: exp on the EUP, approx reciprocal also rides the EUP slot.
    o_ref[...] = pl.reciprocal(1.0 + jnp.exp(-z), approx=True)


def prepare_params(w1, b1, w2, b2):
    """Pad params once (outside the per-call path).

    (in_features, out_features) layout:
      w1: (784, 400), b1: (400,) or (1,400), w2: (400, 1), b2: (1,) or (1,1).
    """
    w1p = jnp.zeros((IN_F, HID_PAD), jnp.bfloat16)
    w1p = w1p.at[:, :HID_F].set(w1.astype(jnp.bfloat16))        # (784, 512) bf16
    b1p = jnp.zeros((1, HID_PAD), jnp.float32)
    b1p = b1p.at[:, :HID_F].set(b1.reshape(1, HID_F).astype(jnp.float32))
    w2p = jnp.zeros((HID_PAD, 1), jnp.bfloat16)
    w2p = w2p.at[:HID_F, :].set(w2.reshape(HID_F, 1).astype(jnp.bfloat16))
    b2p = b2.reshape(1, 1).astype(jnp.float32)
    return w1p, b1p, w2p, b2p


def discriminator_forward(x, w1p, b1p, w2p, b2p):
    """x: any shape with trailing elements a multiple of 784 (e.g. (B,1,28,28))."""
    x2d = x.reshape(-1, IN_F).astype(jnp.float32)               # x.view(-1, 784)
    B = x2d.shape[0]
    tile_b = _choose_tile_b(B)
    n_tiles = pl.cdiv(B, tile_b)                                # ragged last block OK

    out = pl.pallas_call(
        discriminator_kernel,
        out_shape=jax.ShapeDtypeStruct((B, 1), jnp.float32),
        grid=(n_tiles,),
        in_specs=[
            pl.BlockSpec((tile_b, IN_F), lambda i: (i, 0)),        # x tile (pipelined)
            pl.BlockSpec((IN_F, HID_PAD), lambda i: (0, 0)),       # w1 VMEM-resident
            pl.BlockSpec((1, HID_PAD), lambda i: (0, 0)),          # b1 resident
            pl.BlockSpec((HID_PAD, 1), lambda i: (0, 0)),          # w2 column resident
            pl.BlockSpec(memory_space=pltpu.MemorySpace.SMEM),     # b2 scalar
        ],
        out_specs=pl.BlockSpec((tile_b, 1), lambda i: (i, 0)),
        compiler_params=pltpu.CompilerParams(
            dimension_semantics=("parallel",),        # megacore split on v7x
            vmem_limit_bytes=32 * 1024 * 1024,        # real footprint << 32 MiB
        ),
    )(x2d, w1p, b1p, w2p, b2p)
    return out


def init_params(key):
    """PyTorch-default-like Linear init (uniform +-1/sqrt(fan_in)); (in, out) layout."""
    k1, k2, k3, k4 = jax.random.split(key, 4)
    lim1 = 1.0 / jnp.sqrt(784.0)
    lim2 = 1.0 / jnp.sqrt(400.0)
    w1 = jax.random.uniform(k1, (784, 400), jnp.float32, -lim1, lim1)
    b1 = jax.random.uniform(k2, (1, 400), jnp.float32, -lim1, lim1)
    w2 = jax.random.uniform(k3, (400, 1), jnp.float32, -lim2, lim2)
    b2 = jax.random.uniform(k4, (1, 1), jnp.float32, -lim2, lim2)
    return w1, b1, w2, b2


if __name__ == "__main__":
    key = jax.random.PRNGKey(0)
    pkey, xkey = jax.random.split(key)

    w1, b1, w2, b2 = init_params(pkey)
    # Weight padding done once, outside the jitted per-call path.
    params = prepare_params(w1, b1, w2, b2)

    # Small MNIST-like batch: (B, 1, 28, 28) -> view(-1, 784)
    B = 4
    x = jax.random.normal(xkey, (B, 1, 28, 28), jnp.float32)

    fwd = jax.jit(discriminator_forward)
    out = jax.block_until_ready(fwd(x, *params))

    # Reference in plain f32 JAX. bf16 matmuls + approx reciprocal -> loosened tol.
    x2d = x.reshape(-1, 784)
    ref = jax.nn.sigmoid(jnp.maximum(x2d @ w1 + b1, 0.0) @ w2 + b2)
    assert out.shape == (B, 1)
    assert jnp.allclose(out, ref, atol=2e-2, rtol=2e-2), (out, ref)

    print("KERNEL_OK")
</pallas_src>

<mosaic_0001>
module attributes {stable_mosaic.version = 11 : i64} {
  func.func @discriminator_kernel(%arg0: i32, %arg1: memref<8x784xf32, #tpu.memory_space<vmem>>, %arg2: memref<784x512xbf16, #tpu.memory_space<vmem>>, %arg3: memref<1x512xf32, #tpu.memory_space<vmem>>, %arg4: memref<512x1xbf16, #tpu.memory_space<vmem>>, %arg5: memref<1x1xf32, #tpu.memory_space<smem>>, %arg6: memref<8x1xf32, #tpu.memory_space<vmem>>) attributes {dimension_semantics = [#tpu.dimension_semantics<parallel>], iteration_bounds = array<i64: 1>, scalar_prefetch = 0 : i64, scratch_operands = 0 : i64, tpu.core_type = #tpu.core_type<tc>, window_params = [{transform_indices = @transform_0, window_bounds = array<i64: 8, 784>}, {pipeline_mode = #tpu.pipeline_mode<synchronous>, transform_indices = @transform_1, window_bounds = array<i64: 784, 512>}, {pipeline_mode = #tpu.pipeline_mode<synchronous>, transform_indices = @transform_2, window_bounds = array<i64: 1, 512>}, {pipeline_mode = #tpu.pipeline_mode<synchronous>, transform_indices = @transform_3, window_bounds = array<i64: 512, 1>}, {transform_indices = @transform_4, window_bounds = array<i64: 1, 1>}, {transform_indices = @transform_5, window_bounds = array<i64: 8, 1>}]} {
    %c0 = arith.constant 0 : index
    %c0_0 = arith.constant 0 : index
    %0 = vector.load %arg1[%c0, %c0_0] : memref<8x784xf32, #tpu.memory_space<vmem>>, vector<8x784xf32>
    %1 = arith.truncf %0 : vector<8x784xf32> to vector<8x784xbf16>
    %c0_1 = arith.constant 0 : index
    %c0_2 = arith.constant 0 : index
    %2 = vector.load %arg2[%c0_1, %c0_2] : memref<784x512xbf16, #tpu.memory_space<vmem>>, vector<784x512xbf16>
    %cst = arith.constant dense<0.000000e+00> : vector<8x512xf32>
    %3 = tpu.matmul %1, %2, %cst {dimension_numbers = #tpu.dot_dimension_numbers<[1], [0], [0], [1], [0, 0, 1, 1], [], []>} : vector<8x784xbf16>, vector<784x512xbf16>, vector<8x512xf32> -> vector<8x512xf32>
    %c0_3 = arith.constant 0 : index
    %c0_4 = arith.constant 0 : index
    %4 = vector.load %arg3[%c0_3, %c0_4] : memref<1x512xf32, #tpu.memory_space<vmem>>, vector<1x512xf32>
    %5 = vector.broadcast %4 : vector<1x512xf32> to vector<8x512xf32>
    %6 = arith.addf %3, %5 : vector<8x512xf32>
    %cst_5 = arith.constant 0.000000e+00 : f32
    %7 = vector.broadcast %cst_5 : f32 to vector<8x512xf32>
    %8 = arith.maximumf %6, %7 : vector<8x512xf32>
    %9 = arith.truncf %8 : vector<8x512xf32> to vector<8x512xbf16>
    %c0_6 = arith.constant 0 : index
    %c0_7 = arith.constant 0 : index
    %10 = vector.load %arg4[%c0_6, %c0_7] : memref<512x1xbf16, #tpu.memory_space<vmem>>, vector<512x1xbf16>
    %cst_8 = arith.constant dense<0.000000e+00> : vector<8x1xf32>
    %11 = tpu.matmul %9, %10, %cst_8 {dimension_numbers = #tpu.dot_dimension_numbers<[1], [0], [0], [1], [0, 0, 1, 1], [], []>} : vector<8x512xbf16>, vector<512x1xbf16>, vector<8x1xf32> -> vector<8x1xf32>
    %c0_9 = arith.constant 0 : index
    %c0_10 = arith.constant 0 : index
    %12 = memref.load %arg5[%c0_9, %c0_10] : memref<1x1xf32, #tpu.memory_space<smem>>
    %13 = vector.broadcast %12 : f32 to vector<8x1xf32>
    %14 = arith.addf %11, %13 : vector<8x1xf32>
    %cst_11 = arith.constant 0.000000e+00 : f32
    %15 = vector.broadcast %cst_11 : f32 to vector<8x1xf32>
    %16 = arith.subf %15, %14 : vector<8x1xf32>
    %17 = math.exp %16 : vector<8x1xf32>
    %cst_12 = arith.constant 1.000000e+00 : f32
    %18 = vector.broadcast %cst_12 : f32 to vector<8x1xf32>
    %19 = arith.addf %18, %17 : vector<8x1xf32>
    %20 = tpu.reciprocal %19 {approx = true} : vector<8x1xf32> -> vector<8x1xf32>
    %c0_13 = arith.constant 0 : index
    %c0_14 = arith.constant 0 : index
    %21 = vector.load %arg6[%c0_13, %c0_14] : memref<8x1xf32, #tpu.memory_space<vmem>>, vector<8x1xf32>
    tpu.vector_store %arg6[%c0_13, %c0_14], %20 {strides = array<i32>} : memref<8x1xf32, #tpu.memory_space<vmem>>, vector<8x1xf32>,
    return
  }
  func.func @transform_0(%arg0: i32) -> (i32, i32) {
    %c0_i32 = arith.constant 0 : i32
    %c0_i32_0 = arith.constant 0 : i32
    return %arg0, %c0_i32 : i32, i32
  }
  func.func @transform_1(%arg0: i32) -> (i32, i32) {
    %c0_i32 = arith.constant 0 : i32
    %c0_i32_0 = arith.constant 0 : i32
    %c0_i32_1 = arith.constant 0 : i32
    return %c0_i32, %c0_i32_0 : i32, i32
  }
  func.func @transform_2(%arg0: i32) -> (i32, i32) {
    %c0_i32 = arith.constant 0 : i32
    %c0_i32_0 = arith.constant 0 : i32
    %c0_i32_1 = arith.constant 0 : i32
    return %c0_i32, %c0_i32_0 : i32, i32
  }
  func.func @transform_3(%arg0: i32) -> (i32, i32) {
    %c0_i32 = arith.constant 0 : i32
    %c0_i32_0 = arith.constant 0 : i32
    %c0_i32_1 = arith.constant 0 : i32
    return %c0_i32, %c0_i32_0 : i32, i32
  }
  func.func @transform_4(%arg0: i32) -> (i32, i32) {
    %c0_i32 = arith.constant 0 : i32
    %c0_i32_0 = arith.constant 0 : i32
    %c0_i32_1 = arith.constant 0 : i32
    return %c0_i32, %c0_i32_0 : i32, i32
  }
  func.func @transform_5(%arg0: i32) -> (i32, i32) {
    %c0_i32 = arith.constant 0 : i32
    %c0_i32_0 = arith.constant 0 : i32
    return %arg0, %c0_i32 : i32, i32
  }
}

</mosaic_0001>

<llo_original>
// kernel: discriminator_forward.1
$region0: #{discriminator_forward.1}
  #allocation0 [shape = 'u32[]', space=smem, size = 0x4, offset = 0x4, fixed_abs, tag = 'smem constant byte address 0x4 - core index']
  #allocation1 [shape = 'u32[72,128]{1,0:T(1,128)}', space=vmem, size = 0x9000, scoped, tag = 'internal scratch']
  #allocation2 [shape = 'f32[1,1]{1,0:T(1,128)S(6)}', space=smem, size = 0x200, scoped, tag = 'scoped memory for discriminator_forward.1']
  %s0 = inlined_call_operand.vmem [shape: f32[4,784], index: 0, kind: input, shape index: {}]
  %s1 = inlined_call_operand.hbm [shape: bf16[784,512], index: 1, kind: input, shape index: {}]
  %s2 = inlined_call_operand.vmem [shape: f32[1,512], index: 2, kind: input, shape index: {}]
  %s3 = inlined_call_operand.vmem [shape: bf16[512,1], index: 3, kind: input, shape index: {}]
  %s4 = inlined_call_operand.<no memory space> [shape: f32[1,1], index: 4, kind: input, shape index: {}]
  %s5 = inlined_call_operand.vmem [shape: f32[4,1], index: 5, kind: output, shape index: {}]
  %s6 = sld [smem:[#allocation0]]
  $region64: #{discriminator_forward.1} parent=0
    _
  %s8 = ssub.s32 1, %s6
  %s9 = scalar_select 0, %s8, %s6
  %10 = sst [smem:[#allocation2]] %s4
  $region1: #{discriminator_forward.1} parent=0
    #allocation3 [shape = 'u8[802816]{0}', space=vmem, size = 0xc4000, scoped, tag = 'input window, operand 1, single buffered']
    #allocation4 [shape = 's32[1]{0}', space=sflag, size = 0x4, scoped, tag = 'scoped memory for discriminator_forward.1']
    #allocation5 [shape = 'u8[4096]{0}', space=vmem, size = 0x1000, scoped, tag = 'output window, operand 0, single buffered']
    %11 = vsyncpa [#allocation4], 0
    // Predicated region
    $region2: #{discriminator_forward.1} parent=1 // pred_check
      _
    $region3: #{discriminator_forward.1} parent=1 // pred_check_branch
      %13 = sbr.rel (0) target = $region5
    $region4: #{discriminator_forward.1} parent=1 // pred_region
      _
    $region5: #{discriminator_forward.1} parent=1 // pred_fallthru
      _
    // Predicated region
    $region6: #{discriminator_forward.1} parent=1 // pred_check
      _
    $region7: #{discriminator_forward.1} parent=1 // pred_check_branch
      %15 = sbr.rel (0) target = $region9
    $region8: #{discriminator_forward.1} parent=1 // pred_region
      %17 = vsyncadd [#allocation4], 0
      %s18 = sshll.u32 %s1, 4
      %s19 = int_to_ptr.hbm [resolvable:$true] %s18
      %s20 = sshll.u32 [#allocation3], 4
      %s21 = int_to_ptr.vmem [resolvable:$true] %s20
      %26 = dma.hbm_to_vmem [thread:$0]  %s19, 25088, %s21, [#allocation4], 256, 256, 16
    $region9: #{discriminator_forward.1} parent=1 // pred_fallthru
      _
    // Predicated region
    $region10: #{discriminator_forward.1} parent=1 // pred_check
      _
    $region11: #{discriminator_forward.1} parent=1 // pred_check_branch
      %28 = sbr.rel (0) target = $region13
    $region12: #{discriminator_forward.1} parent=1 // pred_region
      _
    $region13: #{discriminator_forward.1} parent=1 // pred_fallthru
      _
    // Predicated region
    $region14: #{discriminator_forward.1} parent=1 // pred_check
      _
    $region15: #{discriminator_forward.1} parent=1 // pred_check_branch
      %30 = sbr.rel (0) target = $region17
    $region16: #{discriminator_forward.1} parent=1 // pred_region
      _
    $region17: #{discriminator_forward.1} parent=1 // pred_fallthru
      _
    // Predicated region
    $region18: #{discriminator_forward.1} parent=1 // pred_check
      _
    $region19: #{discriminator_forward.1} parent=1 // pred_check_branch
      %32 = sbr.rel (0) target = $region21
    $region20: #{discriminator_forward.1} parent=1 // pred_region
      _
    $region21: #{discriminator_forward.1} parent=1 // pred_fallthru
      _
    // Predicated region
    $region22: #{discriminator_forward.1} parent=1 // pred_check
      _
    $region23: #{discriminator_forward.1} parent=1 // pred_check_branch
      %34 = sbr.rel (0) target = $region25
    $region24: #{discriminator_forward.1} parent=1 // pred_region
      %36 = dma.done [#allocation4], 25088
    $region25: #{discriminator_forward.1} parent=1 // pred_fallthru
      _
    %v38 = vld [vmem:[%s0] sm:$0xff]
    %v39 = vld [vmem:[%s0 + $0x8] sm:$0xff]
    %v40 = vld [vmem:[%s0 + $0x10] sm:$0xff]
    %v41 = vld [vmem:[%s0 + $0x18] sm:$0xf]
    %v42 = vld [vmem:[%s0 + $0x1c] sm:$0xff]
    %v43 = vld [vmem:[%s0 + $0x24] sm:$0xff]
    %v44 = vld [vmem:[%s0 + $0x2c] sm:$0xff]
    %v45 = vld [vmem:[%s0 + $0x34] sm:$0xf]
    %54 = vst [vmem:[#allocation1] ss:$2 sm:$0xff] %v38
    %s55 = scalar_lea.vmem [#allocation1], 1
    %56 = vst [vmem:[%s55] ss:$2 sm:$0xff] %v42
    %s57 = scalar_lea.vmem [#allocation1], 16
    %58 = vst [vmem:[%s57] ss:$2 sm:$0xff] %v39
    %s59 = scalar_lea.vmem [#allocation1], 17
    %60 = vst [vmem:[%s59] ss:$2 sm:$0xff] %v43
    %s61 = scalar_lea.vmem [#allocation1], 32
    %62 = vst [vmem:[%s61] ss:$2 sm:$0xff] %v40
    %s63 = scalar_lea.vmem [#allocation1], 33
    %64 = vst [vmem:[%s63] ss:$2 sm:$0xff] %v44
    %s65 = scalar_lea.vmem [#allocation1], 48
    %66 = vst [vmem:[%s65] ss:$2 sm:$0xff] %v41
    %s67 = scalar_lea.vmem [#allocation1], 49
    %68 = vst [vmem:[%s67] ss:$2 sm:$0xff] %v45
    %v69 = vld.sshfl [vmem:[#allocation1] sm:$0xff pattern:$0x75316420]
    %v70 = vld.sshfl [vmem:[#allocation1 + $0x8] sm:$0xff pattern:$0x75316420]
    %v71 = vld.sshfl [vmem:[#allocation1 + $0x10] sm:$0xff pattern:$0x75316420]
    %v72 = vld.sshfl [vmem:[#allocation1 + $0x18] sm:$0xff pattern:$0x75316420]
    %v73 = vld.sshfl [vmem:[#allocation1 + $0x20] sm:$0xff pattern:$0x75316420]
    %v74 = vld.sshfl [vmem:[#allocation1 + $0x28] sm:$0xff pattern:$0x75316420]
    %v75 = vld.sshfl [vmem:[#allocation1 + $0x30] sm:$0xff pattern:$0x75316420]
    %v83 = vpack.c.bf16 %v69, %v69
    %v84 = vpack.c.bf16 %v70, %v70
    %v85 = vpack.c.bf16 %v71, %v71
    %v86 = vpack.c.bf16 %v72, %v72
    %v87 = vpack.c.bf16 %v73, %v73
    %v88 = vpack.c.bf16 %v74, %v74
    %v89 = vpack.c.bf16 %v75, %v75
    %v90 = vld [vmem:[#allocation3] sm:$0xff]
    %v91 = vld [vmem:[#allocation3 + $0x8] sm:$0xff]
    %v92 = vld [vmem:[#allocation3 + $0x10] sm:$0xff]
    %v93 = vld [vmem:[#allocation3 + $0x18] sm:$0xff]
    %v94 = vld [vmem:[#allocation3 + $0x20] sm:$0xff]
    %v95 = vld [vmem:[#allocation3 + $0x28] sm:$0xff]
    %v96 = vld [vmem:[#allocation3 + $0x30] sm:$0xff]
    %v97 = vld [vmem:[#allocation3 + $0x38] sm:$0xff]
    %v98 = vld [vmem:[#allocation3 + $0x40] sm:$0xff]
    %v99 = vld [vmem:[#allocation3 + $0x48] sm:$0xff]
    %v100 = vld [vmem:[#allocation3 + $0x50] sm:$0xff]
    %v101 = vld [vmem:[#allocation3 + $0x58] sm:$0xff]
    %v102 = vld [vmem:[#allocation3 + $0x60] sm:$0xff]
    %v103 = vld [vmem:[#allocation3 + $0x68] sm:$0xff]
    %v104 = vld [vmem:[#allocation3 + $0x70] sm:$0xff]
    %v105 = vld [vmem:[#allocation3 + $0x78] sm:$0xff]
    %v106 = vld [vmem:[#allocation3 + $0x80] sm:$0xff]
    %v107 = vld [vmem:[#allocation3 + $0x88] sm:$0xff]
    %v108 = vld [vmem:[#allocation3 + $0x90] sm:$0xff]
    %v109 = vld [vmem:[#allocation3 + $0x98] sm:$0xff]
    %v110 = vld [vmem:[#allocation3 + $0xa0] sm:$0xff]
    %v111 = vld [vmem:[#allocation3 + $0xa8] sm:$0xff]
    %v112 = vld [vmem:[#allocation3 + $0xb0] sm:$0xff]
    %v113 = vld [vmem:[#allocation3 + $0xb8] sm:$0xff]
    %v114 = vld [vmem:[#allocation3 + $0xc0] sm:$0xff]
    %v115 = vld [vmem:[#allocation3 + $0xc8] sm:$0xff]
    %v116 = vld [vmem:[#allocation3 + $0xd0] sm:$0xff]
    %v117 = vld [vmem:[#allocation3 + $0xd8] sm:$0xff]
    %v118 = vld [vmem:[#allocation3 + $0xe0] sm:$0xff]
    %v119 = vld [vmem:[#allocation3 + $0xe8] sm:$0xff]
    %v120 = vld [vmem:[#allocation3 + $0xf0] sm:$0xff]
    %v121 = vld [vmem:[#allocation3 + $0xf8] sm:$0xff]
    %v122 = vld [vmem:[#allocation3 + $0x100] sm:$0xff]
    %v123 = vld [vmem:[#allocation3 + $0x108] sm:$0xff]
    %v124 = vld [vmem:[#allocation3 + $0x110] sm:$0xff]
    %v125 = vld [vmem:[#allocation3 + $0x118] sm:$0xff]
    %v126 = vld [vmem:[#allocation3 + $0x120] sm:$0xff]
    %v127 = vld [vmem:[#allocation3 + $0x128] sm:$0xff]
    %v128 = vld [vmem:[#allocation3 + $0x130] sm:$0xff]
    %v129 = vld [vmem:[#allocation3 + $0x138] sm:$0xff]
    %v130 = vld [vmem:[#allocation3 + $0x140] sm:$0xff]
    %v131 = vld [vmem:[#allocation3 + $0x148] sm:$0xff]
    %v132 = vld [vmem:[#allocation3 + $0x150] sm:$0xff]
    %v133 = vld [vmem:[#allocation3 + $0x158] sm:$0xff]
    %v134 = vld [vmem:[#allocation3 + $0x160] sm:$0xff]
    %v135 = vld [vmem:[#allocation3 + $0x168] sm:$0xff]
    %v136 = vld [vmem:[#allocation3 + $0x170] sm:$0xff]
    %v137 = vld [vmem:[#allocation3 + $0x178] sm:$0xff]
    %v138 = vld [vmem:[#allocation3 + $0x180] sm:$0xff]
    %v139 = vld [vmem:[#allocation3 + $0x188] sm:$0xff]
    %v140 = vld [vmem:[#allocation3 + $0x190] sm:$0xff]
    %v141 = vld [vmem:[#allocation3 + $0x198] sm:$0xff]
    %v142 = vld [vmem:[#allocation3 + $0x1a0] sm:$0xff]
    %v143 = vld [vmem:[#allocation3 + $0x1a8] sm:$0xff]
    %v144 = vld [vmem:[#allocation3 + $0x1b0] sm:$0xff]
    %v145 = vld [vmem:[#allocation3 + $0x1b8] sm:$0xff]
    %v146 = vld [vmem:[#allocation3 + $0x1c0] sm:$0xff]
    %v147 = vld [vmem:[#allocation3 + $0x1c8] sm:$0xff]
    %v148 = vld [vmem:[#allocation3 + $0x1d0] sm:$0xff]
    %v149 = vld [vmem:[#allocation3 + $0x1d8] sm:$0xff]
    %v150 = vld [vmem:[#allocation3 + $0x1e0] sm:$0xff]
    %v151 = vld [vmem:[#allocation3 + $0x1e8] sm:$0xff]
    %v152 = vld [vmem:[#allocation3 + $0x1f0] sm:$0xff]
    %v153 = vld [vmem:[#allocation3 + $0x1f8] sm:$0xff]
    %v154 = vld [vmem:[#allocation3 + $0x200] sm:$0xff]
    %v155 = vld [vmem:[#allocation3 + $0x208] sm:$0xff]
    %v156 = vld [vmem:[#allocation3 + $0x210] sm:$0xff]
    %v157 = vld [vmem:[#allocation3 + $0x218] sm:$0xff]
    %v158 = vld [vmem:[#allocation3 + $0x220] sm:$0xff]
    %v159 = vld [vmem:[#allocation3 + $0x228] sm:$0xff]
    %v160 = vld [vmem:[#allocation3 + $0x230] sm:$0xff]
    %v161 = vld [vmem:[#allocation3 + $0x238] sm:$0xff]
    %v162 = vld [vmem:[#allocation3 + $0x240] sm:$0xff]
    %v163 = vld [vmem:[#allocation3 + $0x248] sm:$0xff]
    %v164 = vld [vmem:[#allocation3 + $0x250] sm:$0xff]
    %v165 = vld [vmem:[#allocation3 + $0x258] sm:$0xff]
    %v166 = vld [vmem:[#allocation3 + $0x260] sm:$0xff]
    %v167 = vld [vmem:[#allocation3 + $0x268] sm:$0xff]
    %v168 = vld [vmem:[#allocation3 + $0x270] sm:$0xff]
    %v169 = vld [vmem:[#allocation3 + $0x278] sm:$0xff]
    %v170 = vld [vmem:[#allocation3 + $0x280] sm:$0xff]
    %v171 = vld [vmem:[#allocation3 + $0x288] sm:$0xff]
    %v172 = vld [vmem:[#allocation3 + $0x290] sm:$0xff]
    %v173 = vld [vmem:[#allocation3 + $0x298] sm:$0xff]
    %v174 = vld [vmem:[#allocation3 + $0x2a0] sm:$0xff]
    %v175 = vld [vmem:[#allocation3 + $0x2a8] sm:$0xff]
    %v176 = vld [vmem:[#allocation3 + $0x2b0] sm:$0xff]
    %v177 = vld [vmem:[#allocation3 + $0x2b8] sm:$0xff]
    %v178 = vld [vmem:[#allocation3 + $0x2c0] sm:$0xff]
    %v179 = vld [vmem:[#allocation3 + $0x2c8] sm:$0xff]
    %v180 = vld [vmem:[#allocation3 + $0x2d0] sm:$0xff]
    %v181 = vld [vmem:[#allocation3 + $0x2d8] sm:$0xff]
    %v182 = vld [vmem:[#allocation3 + $0x2e0] sm:$0xff]
    %v183 = vld [vmem:[#allocation3 + $0x2e8] sm:$0xff]
    %v184 = vld [vmem:[#allocation3 + $0x2f0] sm:$0xff]
    %v185 = vld [vmem:[#allocation3 + $0x2f8] sm:$0xff]
    %v186 = vld [vmem:[#allocation3 + $0x300] sm:$0xff]
    %v187 = vld [vmem:[#allocation3 + $0x308] sm:$0xff]
    %v188 = vld [vmem:[#allocation3 + $0x310] sm:$0xff]
    %v189 = vld [vmem:[#allocation3 + $0x318] sm:$0xff]
    %v190 = vld [vmem:[#allocation3 + $0x320] sm:$0xff]
    %v191 = vld [vmem:[#allocation3 + $0x328] sm:$0xff]
    %v192 = vld [vmem:[#allocation3 + $0x330] sm:$0xff]
    %v193 = vld [vmem:[#allocation3 + $0x338] sm:$0xff]
    %v194 = vld [vmem:[#allocation3 + $0x340] sm:$0xff]
    %v195 = vld [vmem:[#allocation3 + $0x348] sm:$0xff]
    %v196 = vld [vmem:[#allocation3 + $0x350] sm:$0xff]
    %v197 = vld [vmem:[#allocation3 + $0x358] sm:$0xff]
    %v198 = vld [vmem:[#allocation3 + $0x360] sm:$0xff]
    %v199 = vld [vmem:[#allocation3 + $0x368] sm:$0xff]
    %v200 = vld [vmem:[#allocation3 + $0x370] sm:$0xff]
    %v201 = vld [vmem:[#allocation3 + $0x378] sm:$0xff]
    %v202 = vld [vmem:[#allocation3 + $0x380] sm:$0xff]
    %v203 = vld [vmem:[#allocation3 + $0x388] sm:$0xff]
    %v204 = vld [vmem:[#allocation3 + $0x390] sm:$0xff]
    %v205 = vld [vmem:[#allocation3 + $0x398] sm:$0xff]
    %v206 = vld [vmem:[#allocation3 + $0x3a0] sm:$0xff]
    %v207 = vld [vmem:[#allocation3 + $0x3a8] sm:$0xff]
    %v208 = vld [vmem:[#allocation3 + $0x3b0] sm:$0xff]
    %v209 = vld [vmem:[#allocation3 + $0x3b8] sm:$0xff]
    %v210 = vld [vmem:[#allocation3 + $0x3c0] sm:$0xff]
    %v211 = vld [vmem:[#allocation3 + $0x3c8] sm:$0xff]
    %v212 = vld [vmem:[#allocation3 + $0x3d0] sm:$0xff]
    %v213 = vld [vmem:[#allocation3 + $0x3d8] sm:$0xff]
    %v214 = vld [vmem:[#allocation3 + $0x3e0] sm:$0xff]
    %v215 = vld [vmem:[#allocation3 + $0x3e8] sm:$0xff]
    %v216 = vld [vmem:[#allocation3 + $0x3f0] sm:$0xff]
    %v217 = vld [vmem:[#allocation3 + $0x3f8] sm:$0xff]
    %v218 = vld [vmem:[#allocation3 + $0x400] sm:$0xff]
    %v219 = vld [vmem:[#allocation3 + $0x408] sm:$0xff]
    %v220 = vld [vmem:[#allocation3 + $0x410] sm:$0xff]
    %v221 = vld [vmem:[#allocation3 + $0x418] sm:$0xff]
    %v222 = vld [vmem:[#allocation3 + $0x420] sm:$0xff]
    %v223 = vld [vmem:[#allocation3 + $0x428] sm:$0xff]
    %v224 = vld [vmem:[#allocation3 + $0x430] sm:$0xff]
    %v225 = vld [vmem:[#allocation3 + $0x438] sm:$0xff]
    %v226 = vld [vmem:[#allocation3 + $0x440] sm:$0xff]
    %v227 = vld [vmem:[#allocation3 + $0x448] sm:$0xff]
    %v228 = vld [vmem:[#allocation3 + $0x450] sm:$0xff]
    %v229 = vld [vmem:[#allocation3 + $0x458] sm:$0xff]
    %v230 = vld [vmem:[#allocation3 + $0x460] sm:$0xff]
    %v231 = vld [vmem:[#allocation3 + $0x468] sm:$0xff]
    %v232 = vld [vmem:[#allocation3 + $0x470] sm:$0xff]
    %v233 = vld [vmem:[#allocation3 + $0x478] sm:$0xff]
    %v234 = vld [vmem:[#allocation3 + $0x480] sm:$0xff]
    %v235 = vld [vmem:[#allocation3 + $0x488] sm:$0xff]
    %v236 = vld [vmem:[#allocation3 + $0x490] sm:$0xff]
    %v237 = vld [vmem:[#allocation3 + $0x498] sm:$0xff]
    %v238 = vld [vmem:[#allocation3 + $0x4a0] sm:$0xff]
    %v239 = vld [vmem:[#allocation3 + $0x4a8] sm:$0xff]
    %v240 = vld [vmem:[#allocation3 + $0x4b0] sm:$0xff]
    %v241 = vld [vmem:[#allocation3 + $0x4b8] sm:$0xff]
    %v242 = vld [vmem:[#allocation3 + $0x4c0] sm:$0xff]
    %v243 = vld [vmem:[#allocation3 + $0x4c8] sm:$0xff]
    %v244 = vld [vmem:[#allocation3 + $0x4d0] sm:$0xff]
    %v245 = vld [vmem:[#allocation3 + $0x4d8] sm:$0xff]
    %v246 = vld [vmem:[#allocation3 + $0x4e0] sm:$0xff]
    %v247 = vld [vmem:[#allocation3 + $0x4e8] sm:$0xff]
    %v248 = vld [vmem:[#allocation3 + $0x4f0] sm:$0xff]
    %v249 = vld [vmem:[#allocation3 + $0x4f8] sm:$0xff]
    %v250 = vld [vmem:[#allocation3 + $0x500] sm:$0xff]
    %v251 = vld [vmem:[#allocation3 + $0x508] sm:$0xff]
    %v252 = vld [vmem:[#allocation3 + $0x510] sm:$0xff]
    %v253 = vld [vmem:[#allocation3 + $0x518] sm:$0xff]
    %v254 = vld [vmem:[#allocation3 + $0x520] sm:$0xff]
    %v255 = vld [vmem:[#allocation3 + $0x528] sm:$0xff]
    %v256 = vld [vmem:[#allocation3 + $0x530] sm:$0xff]
    %v257 = vld [vmem:[#allocation3 + $0x538] sm:$0xff]
    %v258 = vld [vmem:[#allocation3 + $0x540] sm:$0xff]
    %v259 = vld [vmem:[#allocation3 + $0x548] sm:$0xff]
    %v260 = vld [vmem:[#allocation3 + $0x550] sm:$0xff]
    %v261 = vld [vmem:[#allocation3 + $0x558] sm:$0xff]
    %v262 = vld [vmem:[#allocation3 + $0x560] sm:$0xff]
    %v263 = vld [vmem:[#allocation3 + $0x568] sm:$0xff]
    %v264 = vld [vmem:[#allocation3 + $0x570] sm:$0xff]
    %v265 = vld [vmem:[#allocation3 + $0x578] sm:$0xff]
    %v266 = vld [vmem:[#allocation3 + $0x580] sm:$0xff]
    %v267 = vld [vmem:[#allocation3 + $0x588] sm:$0xff]
    %v268 = vld [vmem:[#allocation3 + $0x590] sm:$0xff]
    %v269 = vld [vmem:[#allocation3 + $0x598] sm:$0xff]
    %v270 = vld [vmem:[#allocation3 + $0x5a0] sm:$0xff]
    %v271 = vld [vmem:[#allocation3 + $0x5a8] sm:$0xff]
    %v272 = vld [vmem:[#allocation3 + $0x5b0] sm:$0xff]
    %v273 = vld [vmem:[#allocation3 + $0x5b8] sm:$0xff]
    %v274 = vld [vmem:[#allocation3 + $0x5c0] sm:$0xff]
    %v275 = vld [vmem:[#allocation3 + $0x5c8] sm:$0xff]
    %v276 = vld [vmem:[#allocation3 + $0x5d0] sm:$0xff]
    %v277 = vld [vmem:[#allocation3 + $0x5d8] sm:$0xff]
    %v278 = vld [vmem:[#allocation3 + $0x5e0] sm:$0xff]
    %v279 = vld [vmem:[#allocation3 + $0x5e8] sm:$0xff]
    %v280 = vld [vmem:[#allocation3 + $0x5f0] sm:$0xff]
    %v281 = vld [vmem:[#allocation3 + $0x5f8] sm:$0xff]
    %v282 = vld [vmem:[#allocation3 + $0x600] sm:$0xff]
    %v283 = vld [vmem:[#allocation3 + $0x608] sm:$0xff]
    %v284 = vld [vmem:[#allocation3 + $0x610] sm:$0xff]
    %v285 = vld [vmem:[#allocation3 + $0x618] sm:$0xff]
    %v286 = vld [vmem:[%s2] sm:$0xf]
    %v288 = vperm.slane %v286, 0
    %v289 = vperm.slane %v286, 1
    %v290 = vperm.slane %v286, 2
    %v291 = vperm.slane %v286, 3
    %v492 = vunpack.c.l.b16 %v90
    %v493 = vunpack.c.h.b16 %v90
    %v494 = vunpack.c.l.b16 %v91
    %v495 = vunpack.c.h.b16 %v91
    %v496 = vunpack.c.l.b16 %v92
    %v497 = vunpack.c.h.b16 %v92
    %v498 = vunpack.c.l.b16 %v93
    %v499 = vunpack.c.h.b16 %v93
    %v500 = vunpack.c.l.b16 %v94
    %v501 = vunpack.c.h.b16 %v94
    %v502 = vunpack.c.l.b16 %v95
    %v503 = vunpack.c.h.b16 %v95
    %v504 = vunpack.c.l.b16 %v96
    %v505 = vunpack.c.h.b16 %v96
    %v506 = vunpack.c.l.b16 %v97
    %v507 = vunpack.c.h.b16 %v97
    %v508 = vunpack.c.l.b16 %v98
    %v509 = vunpack.c.h.b16 %v98
    %v510 = vunpack.c.l.b16 %v99
    %v511 = vunpack.c.h.b16 %v99
    %v512 = vunpack.c.l.b16 %v100
    %v513 = vunpack.c.h.b16 %v100
    %v514 = vunpack.c.l.b16 %v101
    %v515 = vunpack.c.h.b16 %v101
    %v516 = vunpack.c.l.b16 %v102
    %v517 = vunpack.c.h.b16 %v102
    %v518 = vunpack.c.l.b16 %v103
    %v519 = vunpack.c.h.b16 %v103
    %v520 = vunpack.c.l.b16 %v104
    %v521 = vunpack.c.h.b16 %v104
    %v522 = vunpack.c.l.b16 %v105
    %v523 = vunpack.c.h.b16 %v105
    %v524 = vunpack.c.l.b16 %v106
    %v525 = vunpack.c.h.b16 %v106
    %v526 = vunpack.c.l.b16 %v107
    %v527 = vunpack.c.h.b16 %v107
    %v528 = vunpack.c.l.b16 %v108
    %v529 = vunpack.c.h.b16 %v108
    %v530 = vunpack.c.l.b16 %v109
    %v531 = vunpack.c.h.b16 %v109
    %v532 = vunpack.c.l.b16 %v110
    %v533 = vunpack.c.h.b16 %v110
    %v534 = vunpack.c.l.b16 %v111
    %v535 = vunpack.c.h.b16 %v111
    %v536 = vunpack.c.l.b16 %v112
    %v537 = vunpack.c.h.b16 %v112
    %v538 = vunpack.c.l.b16 %v113
    %v539 = vunpack.c.h.b16 %v113
    %v540 = vunpack.c.l.b16 %v114
    %v541 = vunpack.c.h.b16 %v114
    %v542 = vunpack.c.l.b16 %v115
    %v543 = vunpack.c.h.b16 %v115
    %v544 = vunpack.c.l.b16 %v116
    %v545 = vunpack.c.h.b16 %v116
    %v546 = vunpack.c.l.b16 %v117
    %v547 = vunpack.c.h.b16 %v117
    %v548 = vunpack.c.l.b16 %v118
    %v549 = vunpack.c.h.b16 %v118
    %v550 = vunpack.c.l.b16 %v119
    %v551 = vunpack.c.h.b16 %v119
    %v552 = vunpack.c.l.b16 %v120
    %v553 = vunpack.c.h.b16 %v120
    %v554 = vunpack.c.l.b16 %v121
    %v555 = vunpack.c.h.b16 %v121
    %v556 = vunpack.c.l.b16 %v122
    %v557 = vunpack.c.h.b16 %v122
    %v558 = vunpack.c.l.b16 %v123
    %v559 = vunpack.c.h.b16 %v123
    %v560 = vunpack.c.l.b16 %v124
    %v561 = vunpack.c.h.b16 %v124
    %v562 = vunpack.c.l.b16 %v125
    %v563 = vunpack.c.h.b16 %v125
    %v564 = vunpack.c.l.b16 %v126
    %v565 = vunpack.c.h.b16 %v126
    %v566 = vunpack.c.l.b16 %v127
    %v567 = vunpack.c.h.b16 %v127
    %v568 = vunpack.c.l.b16 %v128
    %v569 = vunpack.c.h.b16 %v128
    %v570 = vunpack.c.l.b16 %v129
    %v571 = vunpack.c.h.b16 %v129
    %v572 = vunpack.c.l.b16 %v130
    %v573 = vunpack.c.h.b16 %v130
    %v574 = vunpack.c.l.b16 %v131
    %v575 = vunpack.c.h.b16 %v131
    %v576 = vunpack.c.l.b16 %v132
    %v577 = vunpack.c.h.b16 %v132
    %v578 = vunpack.c.l.b16 %v133
    %v579 = vunpack.c.h.b16 %v133
    %v580 = vunpack.c.l.b16 %v134
    %v581 = vunpack.c.h.b16 %v134
    %v582 = vunpack.c.l.b16 %v135
    %v583 = vunpack.c.h.b16 %v135
    %v584 = vunpack.c.l.b16 %v136
    %v585 = vunpack.c.h.b16 %v136
    %v586 = vunpack.c.l.b16 %v137
    %v587 = vunpack.c.h.b16 %v137
    %v588 = vunpack.c.l.b16 %v138
    %v589 = vunpack.c.h.b16 %v138
    %v590 = vunpack.c.l.b16 %v139
    %v591 = vunpack.c.h.b16 %v139
    %v592 = vunpack.c.l.b16 %v140
    %v593 = vunpack.c.h.b16 %v140
    %v594 = vunpack.c.l.b16 %v141
    %v595 = vunpack.c.h.b16 %v141
    %v596 = vunpack.c.l.b16 %v142
    %v597 = vunpack.c.h.b16 %v142
    %v598 = vunpack.c.l.b16 %v143
    %v599 = vunpack.c.h.b16 %v143
    %v600 = vunpack.c.l.b16 %v144
    %v601 = vunpack.c.h.b16 %v144
    %v602 = vunpack.c.l.b16 %v145
    %v603 = vunpack.c.h.b16 %v145
    %v604 = vunpack.c.l.b16 %v146
    %v605 = vunpack.c.h.b16 %v146
    %v606 = vunpack.c.l.b16 %v147
    %v607 = vunpack.c.h.b16 %v147
    %v608 = vunpack.c.l.b16 %v148
    %v609 = vunpack.c.h.b16 %v148
    %v610 = vunpack.c.l.b16 %v149
    %v611 = vunpack.c.h.b16 %v149
    %v612 = vunpack.c.l.b16 %v150
    %v613 = vunpack.c.h.b16 %v150
    %v614 = vunpack.c.l.b16 %v151
    %v615 = vunpack.c.h.b16 %v151
    %v616 = vunpack.c.l.b16 %v152
    %v617 = vunpack.c.h.b16 %v152
    %v618 = vunpack.c.l.b16 %v153
    %v619 = vunpack.c.h.b16 %v153
    %v620 = vunpack.c.l.b16 %v154
    %v621 = vunpack.c.h.b16 %v154
    %v622 = vunpack.c.l.b16 %v155
    %v623 = vunpack.c.h.b16 %v155
    %v624 = vunpack.c.l.b16 %v156
    %v625 = vunpack.c.h.b16 %v156
    %v626 = vunpack.c.l.b16 %v157
    %v627 = vunpack.c.h.b16 %v157
    %v628 = vunpack.c.l.b16 %v158
    %v629 = vunpack.c.h.b16 %v158
    %v630 = vunpack.c.l.b16 %v159
    %v631 = vunpack.c.h.b16 %v159
    %v632 = vunpack.c.l.b16 %v160
    %v633 = vunpack.c.h.b16 %v160
    %v634 = vunpack.c.l.b16 %v161
    %v635 = vunpack.c.h.b16 %v161
    %v636 = vunpack.c.l.b16 %v162
    %v637 = vunpack.c.h.b16 %v162
    %v638 = vunpack.c.l.b16 %v163
    %v639 = vunpack.c.h.b16 %v163
    %v640 = vunpack.c.l.b16 %v164
    %v641 = vunpack.c.h.b16 %v164
    %v642 = vunpack.c.l.b16 %v165
    %v643 = vunpack.c.h.b16 %v165
    %v644 = vunpack.c.l.b16 %v166
    %v645 = vunpack.c.h.b16 %v166
    %v646 = vunpack.c.l.b16 %v167
    %v647 = vunpack.c.h.b16 %v167
    %v648 = vunpack.c.l.b16 %v168
    %v649 = vunpack.c.h.b16 %v168
    %v650 = vunpack.c.l.b16 %v169
    %v651 = vunpack.c.h.b16 %v169
    %v652 = vunpack.c.l.b16 %v170
    %v653 = vunpack.c.h.b16 %v170
    %v654 = vunpack.c.l.b16 %v171
    %v655 = vunpack.c.h.b16 %v171
    %v656 = vunpack.c.l.b16 %v172
    %v657 = vunpack.c.h.b16 %v172
    %v658 = vunpack.c.l.b16 %v173
    %v659 = vunpack.c.h.b16 %v173
    %v660 = vunpack.c.l.b16 %v174
    %v661 = vunpack.c.h.b16 %v174
    %v662 = vunpack.c.l.b16 %v175
    %v663 = vunpack.c.h.b16 %v175
    %v664 = vunpack.c.l.b16 %v176
    %v665 = vunpack.c.h.b16 %v176
    %v666 = vunpack.c.l.b16 %v177
    %v667 = vunpack.c.h.b16 %v177
    %v668 = vunpack.c.l.b16 %v178
    %v669 = vunpack.c.h.b16 %v178
    %v670 = vunpack.c.l.b16 %v179
    %v671 = vunpack.c.h.b16 %v179
    %v672 = vunpack.c.l.b16 %v180
    %v673 = vunpack.c.h.b16 %v180
    %v674 = vunpack.c.l.b16 %v181
    %v675 = vunpack.c.h.b16 %v181
    %v676 = vunpack.c.l.b16 %v182
    %v677 = vunpack.c.h.b16 %v182
    %v678 = vunpack.c.l.b16 %v183
    %v679 = vunpack.c.h.b16 %v183
    %v680 = vunpack.c.l.b16 %v184
    %v681 = vunpack.c.h.b16 %v184
    %v682 = vunpack.c.l.b16 %v185
    %v683 = vunpack.c.h.b16 %v185
    %v684 = vunpack.c.l.b16 %v186
    %v685 = vunpack.c.h.b16 %v186
    %v686 = vunpack.c.l.b16 %v187
    %v687 = vunpack.c.h.b16 %v187
    %v688 = vunpack.c.l.b16 %v188
    %v689 = vunpack.c.h.b16 %v188
    %v690 = vunpack.c.l.b16 %v189
    %v691 = vunpack.c.h.b16 %v189
    %v692 = vunpack.c.l.b16 %v190
    %v693 = vunpack.c.h.b16 %v190
    %v694 = vunpack.c.l.b16 %v191
    %v695 = vunpack.c.h.b16 %v191
    %v696 = vunpack.c.l.b16 %v192
    %v697 = vunpack.c.h.b16 %v192
    %v698 = vunpack.c.l.b16 %v193
    %v699 = vunpack.c.h.b16 %v193
    %v700 = vunpack.c.l.b16 %v194
    %v701 = vunpack.c.h.b16 %v194
    %v702 = vunpack.c.l.b16 %v195
    %v703 = vunpack.c.h.b16 %v195
    %v704 = vunpack.c.l.b16 %v196
    %v705 = vunpack.c.h.b16 %v196
    %v706 = vunpack.c.l.b16 %v197
    %v707 = vunpack.c.h.b16 %v197
    %v708 = vunpack.c.l.b16 %v198
    %v709 = vunpack.c.h.b16 %v198
    %v710 = vunpack.c.l.b16 %v199
    %v711 = vunpack.c.h.b16 %v199
    %v712 = vunpack.c.l.b16 %v200
    %v713 = vunpack.c.h.b16 %v200
    %v714 = vunpack.c.l.b16 %v201
    %v715 = vunpack.c.h.b16 %v201
    %v716 = vunpack.c.l.b16 %v202
    %v717 = vunpack.c.h.b16 %v202
    %v718 = vunpack.c.l.b16 %v203
    %v719 = vunpack.c.h.b16 %v203
    %v720 = vunpack.c.l.b16 %v204
    %v721 = vunpack.c.h.b16 %v204
    %v722 = vunpack.c.l.b16 %v205
    %v723 = vunpack.c.h.b16 %v205
    %v724 = vunpack.c.l.b16 %v206
    %v725 = vunpack.c.h.b16 %v206
    %v726 = vunpack.c.l.b16 %v207
    %v727 = vunpack.c.h.b16 %v207
    %v728 = vunpack.c.l.b16 %v208
    %v729 = vunpack.c.h.b16 %v208
    %v730 = vunpack.c.l.b16 %v209
    %v731 = vunpack.c.h.b16 %v209
    %v732 = vunpack.c.l.b16 %v210
    %v733 = vunpack.c.h.b16 %v210
    %v734 = vunpack.c.l.b16 %v211
    %v735 = vunpack.c.h.b16 %v211
    %v736 = vunpack.c.l.b16 %v212
    %v737 = vunpack.c.h.b16 %v212
    %v738 = vunpack.c.l.b16 %v213
    %v739 = vunpack.c.h.b16 %v213
    %v740 = vunpack.c.l.b16 %v214
    %v741 = vunpack.c.h.b16 %v214
    %v742 = vunpack.c.l.b16 %v215
    %v743 = vunpack.c.h.b16 %v215
    %v744 = vunpack.c.l.b16 %v216
    %v745 = vunpack.c.h.b16 %v216
    %v746 = vunpack.c.l.b16 %v217
    %v747 = vunpack.c.h.b16 %v217
    %v748 = vunpack.c.l.b16 %v218
    %v749 = vunpack.c.h.b16 %v218
    %v750 = vunpack.c.l.b16 %v219
    %v751 = vunpack.c.h.b16 %v219
    %v752 = vunpack.c.l.b16 %v220
    %v753 = vunpack.c.h.b16 %v220
    %v754 = vunpack.c.l.b16 %v221
    %v755 = vunpack.c.h.b16 %v221
    %v756 = vunpack.c.l.b16 %v222
    %v757 = vunpack.c.h.b16 %v222
    %v758 = vunpack.c.l.b16 %v223
    %v759 = vunpack.c.h.b16 %v223
    %v760 = vunpack.c.l.b16 %v224
    %v761 = vunpack.c.h.b16 %v224
    %v762 = vunpack.c.l.b16 %v225
    %v763 = vunpack.c.h.b16 %v225
    %v764 = vunpack.c.l.b16 %v226
    %v765 = vunpack.c.h.b16 %v226
    %v766 = vunpack.c.l.b16 %v227
    %v767 = vunpack.c.h.b16 %v227
    %v768 = vunpack.c.l.b16 %v228
    %v769 = vunpack.c.h.b16 %v228
    %v770 = vunpack.c.l.b16 %v229
    %v771 = vunpack.c.h.b16 %v229
    %v772 = vunpack.c.l.b16 %v230
    %v773 = vunpack.c.h.b16 %v230
    %v774 = vunpack.c.l.b16 %v231
    %v775 = vunpack.c.h.b16 %v231
    %v776 = vunpack.c.l.b16 %v232
    %v777 = vunpack.c.h.b16 %v232
    %v778 = vunpack.c.l.b16 %v233
    %v779 = vunpack.c.h.b16 %v233
    %v780 = vunpack.c.l.b16 %v234
    %v781 = vunpack.c.h.b16 %v234
    %v782 = vunpack.c.l.b16 %v235
    %v783 = vunpack.c.h.b16 %v235
    %v784 = vunpack.c.l.b16 %v236
    %v785 = vunpack.c.h.b16 %v236
    %v786 = vunpack.c.l.b16 %v237
    %v787 = vunpack.c.h.b16 %v237
    %v788 = vunpack.c.l.b16 %v238
    %v789 = vunpack.c.h.b16 %v238
    %v790 = vunpack.c.l.b16 %v239
    %v791 = vunpack.c.h.b16 %v239
    %v792 = vunpack.c.l.b16 %v240
    %v793 = vunpack.c.h.b16 %v240
    %v794 = vunpack.c.l.b16 %v241
    %v795 = vunpack.c.h.b16 %v241
    %v796 = vunpack.c.l.b16 %v242
    %v797 = vunpack.c.h.b16 %v242
    %v798 = vunpack.c.l.b16 %v243
    %v799 = vunpack.c.h.b16 %v243
    %v800 = vunpack.c.l.b16 %v244
    %v801 = vunpack.c.h.b16 %v244
    %v802 = vunpack.c.l.b16 %v245
    %v803 = vunpack.c.h.b16 %v245
    %v804 = vunpack.c.l.b16 %v246
    %v805 = vunpack.c.h.b16 %v246
    %v806 = vunpack.c.l.b16 %v247
    %v807 = vunpack.c.h.b16 %v247
    %v808 = vunpack.c.l.b16 %v248
    %v809 = vunpack.c.h.b16 %v248
    %v810 = vunpack.c.l.b16 %v249
    %v811 = vunpack.c.h.b16 %v249
    %v812 = vunpack.c.l.b16 %v250
    %v813 = vunpack.c.h.b16 %v250
    %v814 = vunpack.c.l.b16 %v251
    %v815 = vunpack.c.h.b16 %v251
    %v816 = vunpack.c.l.b16 %v252
    %v817 = vunpack.c.h.b16 %v252
    %v818 = vunpack.c.l.b16 %v253
    %v819 = vunpack.c.h.b16 %v253
    %v820 = vunpack.c.l.b16 %v254
    %v821 = vunpack.c.h.b16 %v254
    %v822 = vunpack.c.l.b16 %v255
    %v823 = vunpack.c.h.b16 %v255
    %v824 = vunpack.c.l.b16 %v256
    %v825 = vunpack.c.h.b16 %v256
    %v826 = vunpack.c.l.b16 %v257
    %v827 = vunpack.c.h.b16 %v257
    %v828 = vunpack.c.l.b16 %v258
    %v829 = vunpack.c.h.b16 %v258
    %v830 = vunpack.c.l.b16 %v259
    %v831 = vunpack.c.h.b16 %v259
    %v832 = vunpack.c.l.b16 %v260
    %v833 = vunpack.c.h.b16 %v260
    %v834 = vunpack.c.l.b16 %v261
    %v835 = vunpack.c.h.b16 %v261
    %v836 = vunpack.c.l.b16 %v262
    %v837 = vunpack.c.h.b16 %v262
    %v838 = vunpack.c.l.b16 %v263
    %v839 = vunpack.c.h.b16 %v263
    %v840 = vunpack.c.l.b16 %v264
    %v841 = vunpack.c.h.b16 %v264
    %v842 = vunpack.c.l.b16 %v265
    %v843 = vunpack.c.h.b16 %v265
    %v844 = vunpack.c.l.b16 %v266
    %v845 = vunpack.c.h.b16 %v266
    %v846 = vunpack.c.l.b16 %v267
    %v847 = vunpack.c.h.b16 %v267
    %v848 = vunpack.c.l.b16 %v268
    %v849 = vunpack.c.h.b16 %v268
    %v850 = vunpack.c.l.b16 %v269
    %v851 = vunpack.c.h.b16 %v269
    %v852 = vunpack.c.l.b16 %v270
    %v853 = vunpack.c.h.b16 %v270
    %v854 = vunpack.c.l.b16 %v271
    %v855 = vunpack.c.h.b16 %v271
    %v856 = vunpack.c.l.b16 %v272
    %v857 = vunpack.c.h.b16 %v272
    %v858 = vunpack.c.l.b16 %v273
    %v859 = vunpack.c.h.b16 %v273
    %v860 = vunpack.c.l.b16 %v274
    %v861 = vunpack.c.h.b16 %v274
    %v862 = vunpack.c.l.b16 %v275
    %v863 = vunpack.c.h.b16 %v275
    %v864 = vunpack.c.l.b16 %v276
    %v865 = vunpack.c.h.b16 %v276
    %v866 = vunpack.c.l.b16 %v277
    %v867 = vunpack.c.h.b16 %v277
    %v868 = vunpack.c.l.b16 %v278
    %v869 = vunpack.c.h.b16 %v278
    %v870 = vunpack.c.l.b16 %v279
    %v871 = vunpack.c.h.b16 %v279
    %v872 = vunpack.c.l.b16 %v280
    %v873 = vunpack.c.h.b16 %v280
    %v874 = vunpack.c.l.b16 %v281
    %v875 = vunpack.c.h.b16 %v281
    %v876 = vunpack.c.l.b16 %v282
    %v877 = vunpack.c.h.b16 %v282
    %v878 = vunpack.c.l.b16 %v283
    %v879 = vunpack.c.h.b16 %v283
    %v880 = vunpack.c.l.b16 %v284
    %v881 = vunpack.c.h.b16 %v284
    %v882 = vunpack.c.l.b16 %v285
    %v883 = vunpack.c.h.b16 %v285
    %v884 = vpack.c.b16 %v496, %v492
    %v885 = vpack.c.b16 %v497, %v493
    %v886 = vpack.c.b16 %v498, %v494
    %v887 = vpack.c.b16 %v499, %v495
    %v888 = vpack.c.b16 %v504, %v500
    %v889 = vpack.c.b16 %v505, %v501
    %v890 = vpack.c.b16 %v506, %v502
    %v891 = vpack.c.b16 %v507, %v503
    %v892 = vpack.c.b16 %v512, %v508
    %v893 = vpack.c.b16 %v513, %v509
    %v894 = vpack.c.b16 %v514, %v510
    %v895 = vpack.c.b16 %v515, %v511
    %v896 = vpack.c.b16 %v520, %v516
    %v897 = vpack.c.b16 %v521, %v517
    %v898 = vpack.c.b16 %v522, %v518
    %v899 = vpack.c.b16 %v523, %v519
    %v900 = vpack.c.b16 %v528, %v524
    %v901 = vpack.c.b16 %v529, %v525
    %v902 = vpack.c.b16 %v530, %v526
    %v903 = vpack.c.b16 %v531, %v527
    %v904 = vpack.c.b16 %v536, %v532
    %v905 = vpack.c.b16 %v537, %v533
    %v906 = vpack.c.b16 %v538, %v534
    %v907 = vpack.c.b16 %v539, %v535
    %v908 = vpack.c.b16 %v544, %v540
    %v909 = vpack.c.b16 %v545, %v541
    %v910 = vpack.c.b16 %v546, %v542
    %v911 = vpack.c.b16 %v547, %v543
    %v912 = vpack.c.b16 %v552, %v548
    %v913 = vpack.c.b16 %v553, %v549
    %v914 = vpack.c.b16 %v554, %v550
    %v915 = vpack.c.b16 %v555, %v551
    %v916 = vpack.c.b16 %v560, %v556
    %v917 = vpack.c.b16 %v561, %v557
    %v918 = vpack.c.b16 %v562, %v558
    %v919 = vpack.c.b16 %v563, %v559
    %v920 = vpack.c.b16 %v568, %v564
    %v921 = vpack.c.b16 %v569, %v565
    %v922 = vpack.c.b16 %v570, %v566
    %v923 = vpack.c.b16 %v571, %v567
    %v924 = vpack.c.b16 %v576, %v572
    %v925 = vpack.c.b16 %v577, %v573
    %v926 = vpack.c.b16 %v578, %v574
    %v927 = vpack.c.b16 %v579, %v575
    %v928 = vpack.c.b16 %v584, %v580
    %v929 = vpack.c.b16 %v585, %v581
    %v930 = vpack.c.b16 %v586, %v582
    %v931 = vpack.c.b16 %v587, %v583
    %v932 = vpack.c.b16 %v592, %v588
    %v933 = vpack.c.b16 %v593, %v589
    %v934 = vpack.c.b16 %v594, %v590
    %v935 = vpack.c.b16 %v595, %v591
    %v936 = vpack.c.b16 %v600, %v596
    %v937 = vpack.c.b16 %v601, %v597
    %v938 = vpack.c.b16 %v602, %v598
    %v939 = vpack.c.b16 %v603, %v599
    %v940 = vpack.c.b16 %v608, %v604
    %v941 = vpack.c.b16 %v609, %v605
    %v942 = vpack.c.b16 %v610, %v606
    %v943 = vpack.c.b16 %v611, %v607
    %v944 = vpack.c.b16 %v616, %v612
    %v945 = vpack.c.b16 %v617, %v613
    %v946 = vpack.c.b16 %v618, %v614
    %v947 = vpack.c.b16 %v619, %v615
    %v948 = vpack.c.b16 %v624, %v620
    %v949 = vpack.c.b16 %v625, %v621
    %v950 = vpack.c.b16 %v626, %v622
    %v951 = vpack.c.b16 %v627, %v623
    %v952 = vpack.c.b16 %v632, %v628
    %v953 = vpack.c.b16 %v633, %v629
    %v954 = vpack.c.b16 %v634, %v630
    %v955 = vpack.c.b16 %v635, %v631
    %v956 = vpack.c.b16 %v640, %v636
    %v957 = vpack.c.b16 %v641, %v637
    %v958 = vpack.c.b16 %v642, %v638
    %v959 = vpack.c.b16 %v643, %v639
    %v960 = vpack.c.b16 %v648, %v644
    %v961 = vpack.c.b16 %v649, %v645
    %v962 = vpack.c.b16 %v650, %v646
    %v963 = vpack.c.b16 %v651, %v647
    %v964 = vpack.c.b16 %v656, %v652
    %v965 = vpack.c.b16 %v657, %v653
    %v966 = vpack.c.b16 %v658, %v654
    %v967 = vpack.c.b16 %v659, %v655
    %v968 = vpack.c.b16 %v664, %v660
    %v969 = vpack.c.b16 %v665, %v661
    %v970 = vpack.c.b16 %v666, %v662
    %v971 = vpack.c.b16 %v667, %v663
    %v972 = vpack.c.b16 %v672, %v668
    %v973 = vpack.c.b16 %v673, %v669
    %v974 = vpack.c.b16 %v674, %v670
    %v975 = vpack.c.b16 %v675, %v671
    %v976 = vpack.c.b16 %v680, %v676
    %v977 = vpack.c.b16 %v681, %v677
    %v978 = vpack.c.b16 %v682, %v678
    %v979 = vpack.c.b16 %v683, %v679
    %v980 = vpack.c.b16 %v688, %v684
    %v981 = vpack.c.b16 %v689, %v685
    %v982 = vpack.c.b16 %v690, %v686
    %v983 = vpack.c.b16 %v691, %v687
    %v984 = vpack.c.b16 %v696, %v692
    %v985 = vpack.c.b16 %v697, %v693
    %v986 = vpack.c.b16 %v698, %v694
    %v987 = vpack.c.b16 %v699, %v695
    %v988 = vpack.c.b16 %v704, %v700
    %v989 = vpack.c.b16 %v705, %v701
    %v990 = vpack.c.b16 %v706, %v702
    %v991 = vpack.c.b16 %v707, %v703
    %v992 = vpack.c.b16 %v712, %v708
    %v993 = vpack.c.b16 %v713, %v709
    %v994 = vpack.c.b16 %v714, %v710
    %v995 = vpack.c.b16 %v715, %v711
    %v996 = vpack.c.b16 %v720, %v716
    %v997 = vpack.c.b16 %v721, %v717
    %v998 = vpack.c.b16 %v722, %v718
    %v999 = vpack.c.b16 %v723, %v719
    %v1000 = vpack.c.b16 %v728, %v724
    %v1001 = vpack.c.b16 %v729, %v725
    %v1002 = vpack.c.b16 %v730, %v726
    %v1003 = vpack.c.b16 %v731, %v727
    %v1004 = vpack.c.b16 %v736, %v732
    %v1005 = vpack.c.b16 %v737, %v733
    %v1006 = vpack.c.b16 %v738, %v734
    %v1007 = vpack.c.b16 %v739, %v735
    %v1008 = vpack.c.b16 %v744, %v740
    %v1009 = vpack.c.b16 %v745, %v741
    %v1010 = vpack.c.b16 %v746, %v742
    %v1011 = vpack.c.b16 %v747, %v743
    %v1012 = vpack.c.b16 %v752, %v748
    %v1013 = vpack.c.b16 %v753, %v749
    %v1014 = vpack.c.b16 %v754, %v750
    %v1015 = vpack.c.b16 %v755, %v751
    %v1016 = vpack.c.b16 %v760, %v756
    %v1017 = vpack.c.b16 %v761, %v757
    %v1018 = vpack.c.b16 %v762, %v758
    %v1019 = vpack.c.b16 %v763, %v759
    %v1020 = vpack.c.b16 %v768, %v764
    %v1021 = vpack.c.b16 %v769, %v765
    %v1022 = vpack.c.b16 %v770, %v766
    %v1023 = vpack.c.b16 %v771, %v767
    %v1024 = vpack.c.b16 %v776, %v772
    %v1025 = vpack.c.b16 %v777, %v773
    %v1026 = vpack.c.b16 %v778, %v774
    %v1027 = vpack.c.b16 %v779, %v775
    %v1028 = vpack.c.b16 %v784, %v780
    %v1029 = vpack.c.b16 %v785, %v781
    %v1030 = vpack.c.b16 %v786, %v782
    %v1031 = vpack.c.b16 %v787, %v783
    %v1032 = vpack.c.b16 %v792, %v788
    %v1033 = vpack.c.b16 %v793, %v789
    %v1034 = vpack.c.b16 %v794, %v790
    %v1035 = vpack.c.b16 %v795, %v791
    %v1036 = vpack.c.b16 %v800, %v796
    %v1037 = vpack.c.b16 %v801, %v797
    %v1038 = vpack.c.b16 %v802, %v798
    %v1039 = vpack.c.b16 %v803, %v799
    %v1040 = vpack.c.b16 %v808, %v804
    %v1041 = vpack.c.b16 %v809, %v805
    %v1042 = vpack.c.b16 %v810, %v806
    %v1043 = vpack.c.b16 %v811, %v807
    %v1044 = vpack.c.b16 %v816, %v812
    %v1045 = vpack.c.b16 %v817, %v813
    %v1046 = vpack.c.b16 %v818, %v814
    %v1047 = vpack.c.b16 %v819, %v815
    %v1048 = vpack.c.b16 %v824, %v820
    %v1049 = vpack.c.b16 %v825, %v821
    %v1050 = vpack.c.b16 %v826, %v822
    %v1051 = vpack.c.b16 %v827, %v823
    %v1052 = vpack.c.b16 %v832, %v828
    %v1053 = vpack.c.b16 %v833, %v829
    %v1054 = vpack.c.b16 %v834, %v830
    %v1055 = vpack.c.b16 %v835, %v831
    %v1056 = vpack.c.b16 %v840, %v836
    %v1057 = vpack.c.b16 %v841, %v837
    %v1058 = vpack.c.b16 %v842, %v838
    %v1059 = vpack.c.b16 %v843, %v839
    %v1060 = vpack.c.b16 %v848, %v844
    %v1061 = vpack.c.b16 %v849, %v845
    %v1062 = vpack.c.b16 %v850, %v846
    %v1063 = vpack.c.b16 %v851, %v847
    %v1064 = vpack.c.b16 %v856, %v852
    %v1065 = vpack.c.b16 %v857, %v853
    %v1066 = vpack.c.b16 %v858, %v854
    %v1067 = vpack.c.b16 %v859, %v855
    %v1068 = vpack.c.b16 %v864, %v860
    %v1069 = vpack.c.b16 %v865, %v861
    %v1070 = vpack.c.b16 %v866, %v862
    %v1071 = vpack.c.b16 %v867, %v863
    %v1072 = vpack.c.b16 %v872, %v868
    %v1073 = vpack.c.b16 %v873, %v869
    %v1074 = vpack.c.b16 %v874, %v870
    %v1075 = vpack.c.b16 %v875, %v871
    %v1076 = vpack.c.b16 %v880, %v876
    %v1077 = vpack.c.b16 %v881, %v877
    %v1078 = vpack.c.b16 %v882, %v878
    %v1079 = vpack.c.b16 %v883, %v879
    %vm1276 = vcmask 130048
    %v1278 = vsel %vm1276, %v89, 0
    %1280 = vmatpush.bf16.msra.mxu0 %v912
    %1281 = vmatpush.bf16.msra.mxu0 %v908
    %1282 = vmatpush.bf16.msra.mxu0 %v904
    %1283 = vmatpush.bf16.msra.mxu0 %v900
    %1284 = vmatpush.bf16.msra.mxu0 %v896
    %1285 = vmatpush.bf16.msra.mxu0 %v892
    %1286 = vmatpush.bf16.msra.mxu0 %v888
    %1287 = vmatpush.bf16.msra.mxu0 %v884
    %1288 = vmatmul.bf16.gmra.mxu0 %v83
    %v1289 = vpop.f32.mrf.mxu0
    %v1290 = vadd.f32 %v288, %v1289
    %v1291 = vpop.f32.mrf.mxu0
    %1292 = vdwg.mxu0
    %1293 = vmatpush.bf16.msra.mxu0 %v944
    %1294 = vmatpush.bf16.msra.mxu0 %v940
    %1295 = vmatpush.bf16.msra.mxu0 %v936
    %1296 = vmatpush.bf16.msra.mxu0 %v932
    %1297 = vmatpush.bf16.msra.mxu0 %v928
    %1298 = vmatpush.bf16.msra.mxu0 %v924
    %1299 = vmatpush.bf16.msra.mxu0 %v920
    %1300 = vmatpush.bf16.msra.mxu0 %v916
    %1301 = vmatmul.bf16.gmra.mxu0 %v84
    %v1302 = vpop.f32.mrf.mxu0
    %v1303 = vadd.f32 %v1290, %v1302
    %v1304 = vpop.f32.mrf.mxu0
    %1305 = vdwg.mxu0
    %1306 = vmatpush.bf16.msra.mxu0 %v976
    %1307 = vmatpush.bf16.msra.mxu0 %v972
    %1308 = vmatpush.bf16.msra.mxu0 %v968
    %1309 = vmatpush.bf16.msra.mxu0 %v964
    %1310 = vmatpush.bf16.msra.mxu0 %v960
    %1311 = vmatpush.bf16.msra.mxu0 %v956
    %1312 = vmatpush.bf16.msra.mxu0 %v952
    %1313 = vmatpush.bf16.msra.mxu0 %v948
    %1314 = vmatmul.bf16.gmra.mxu0 %v85
    %v1315 = vpop.f32.mrf.mxu0
    %v1316 = vadd.f32 %v1303, %v1315
    %v1317 = vpop.f32.mrf.mxu0
    %1318 = vdwg.mxu0
    %1319 = vmatpush.bf16.msra.mxu0 %v1008
    %1320 = vmatpush.bf16.msra.mxu0 %v1004
    %1321 = vmatpush.bf16.msra.mxu0 %v1000
    %1322 = vmatpush.bf16.msra.mxu0 %v996
    %1323 = vmatpush.bf16.msra.mxu0 %v992
    %1324 = vmatpush.bf16.msra.mxu0 %v988
    %1325 = vmatpush.bf16.msra.mxu0 %v984
    %1326 = vmatpush.bf16.msra.mxu0 %v980
    %1327 = vmatmul.bf16.gmra.mxu0 %v86
    %v1328 = vpop.f32.mrf.mxu0
    %v1329 = vadd.f32 %v1316, %v1328
    %v1330 = vpop.f32.mrf.mxu0
    %1331 = vdwg.mxu0
    %1332 = vmatpush.bf16.msra.mxu0 %v1040
    %1333 = vmatpush.bf16.msra.mxu0 %v1036
    %1334 = vmatpush.bf16.msra.mxu0 %v1032
    %1335 = vmatpush.bf16.msra.mxu0 %v1028
    %1336 = vmatpush.bf16.msra.mxu0 %v1024
    %1337 = vmatpush.bf16.msra.mxu0 %v1020
    %1338 = vmatpush.bf16.msra.mxu0 %v1016
    %1339 = vmatpush.bf16.msra.mxu0 %v1012
    %1340 = vmatmul.bf16.gmra.mxu0 %v87
    %v1341 = vpop.f32.mrf.mxu0
    %v1342 = vadd.f32 %v1329, %v1341
    %v1343 = vpop.f32.mrf.mxu0
    %1344 = vdwg.mxu0
    %1345 = vmatpush.bf16.msra.mxu0 %v1072
    %1346 = vmatpush.bf16.msra.mxu0 %v1068
    %1347 = vmatpush.bf16.msra.mxu0 %v1064
    %1348 = vmatpush.bf16.msra.mxu0 %v1060
    %1349 = vmatpush.bf16.msra.mxu0 %v1056
    %1350 = vmatpush.bf16.msra.mxu0 %v1052
    %1351 = vmatpush.bf16.msra.mxu0 %v1048
    %1352 = vmatpush.bf16.msra.mxu0 %v1044
    %1353 = vmatmul.bf16.gmra.mxu0 %v88
    %v1354 = vpop.f32.mrf.mxu0
    %v1355 = vadd.f32 %v1342, %v1354
    %v1356 = vpop.f32.mrf.mxu0
    %1357 = vdwg.mxu0
    %1358 = vmatpush.bf16.msra.mxu0 0
    %1359 = vmatpush.bf16.msra.mxu0 0
    %1360 = vmatpush.bf16.msra.mxu0 0
    %1361 = vmatpush.bf16.msra.mxu0 0
    %1362 = vmatpush.bf16.msra.mxu0 0
    %1363 = vmatpush.bf16.msra.mxu0 0
    %1364 = vmatpush.bf16.msra.mxu0 0
    %1365 = vmatpush.bf16.msra.mxu0 %v1076
    %1366 = vmatmul.bf16.gmra.mxu0 %v1278
    %v1367 = vpop.f32.mrf.mxu0
    %v1368 = vadd.f32 %v1355, %v1367
    %v1369 = vpop.f32.mrf.mxu0
    %1370 = vdwg.mxu0
    %1371 = vmatpush.bf16.msra.mxu0 %v913
    %1372 = vmatpush.bf16.msra.mxu0 %v909
    %1373 = vmatpush.bf16.msra.mxu0 %v905
    %1374 = vmatpush.bf16.msra.mxu0 %v901
    %1375 = vmatpush.bf16.msra.mxu0 %v897
    %1376 = vmatpush.bf16.msra.mxu0 %v893
    %1377 = vmatpush.bf16.msra.mxu0 %v889
    %1378 = vmatpush.bf16.msra.mxu0 %v885
    %1379 = vmatmul.bf16.gmra.mxu0 %v83
    %v1380 = vpop.f32.mrf.mxu0
    %v1381 = vadd.f32 %v289, %v1380
    %v1382 = vpop.f32.mrf.mxu0
    %1383 = vdwg.mxu0
    %1384 = vmatpush.bf16.msra.mxu0 %v945
    %1385 = vmatpush.bf16.msra.mxu0 %v941
    %1386 = vmatpush.bf16.msra.mxu0 %v937
    %1387 = vmatpush.bf16.msra.mxu0 %v933
    %1388 = vmatpush.bf16.msra.mxu0 %v929
    %1389 = vmatpush.bf16.msra.mxu0 %v925
    %1390 = vmatpush.bf16.msra.mxu0 %v921
    %1391 = vmatpush.bf16.msra.mxu0 %v917
    %1392 = vmatmul.bf16.gmra.mxu0 %v84
    %v1393 = vpop.f32.mrf.mxu0
    %v1394 = vadd.f32 %v1381, %v1393
    %v1395 = vpop.f32.mrf.mxu0
    %1396 = vdwg.mxu0
    %1397 = vmatpush.bf16.msra.mxu0 %v977
    %1398 = vmatpush.bf16.msra.mxu0 %v973
    %1399 = vmatpush.bf16.msra.mxu0 %v969
    %1400 = vmatpush.bf16.msra.mxu0 %v965
    %1401 = vmatpush.bf16.msra.mxu0 %v961
    %1402 = vmatpush.bf16.msra.mxu0 %v957
    %1403 = vmatpush.bf16.msra.mxu0 %v953
    %1404 = vmatpush.bf16.msra.mxu0 %v949
    %1405 = vmatmul.bf16.gmra.mxu0 %v85
    %v1406 = vpop.f32.mrf.mxu0
    %v1407 = vadd.f32 %v1394, %v1406
    %v1408 = vpop.f32.mrf.mxu0
    %1409 = vdwg.mxu0
    %1410 = vmatpush.bf16.msra.mxu0 %v1009
    %1411 = vmatpush.bf16.msra.mxu0 %v1005
    %1412 = vmatpush.bf16.msra.mxu0 %v1001
    %1413 = vmatpush.bf16.msra.mxu0 %v997
    %1414 = vmatpush.bf16.msra.mxu0 %v993
    %1415 = vmatpush.bf16.msra.mxu0 %v989
    %1416 = vmatpush.bf16.msra.mxu0 %v985
    %1417 = vmatpush.bf16.msra.mxu0 %v981
    %1418 = vmatmul.bf16.gmra.mxu0 %v86
    %v1419 = vpop.f32.mrf.mxu0
    %v1420 = vadd.f32 %v1407, %v1419
    %v1421 = vpop.f32.mrf.mxu0
    %1422 = vdwg.mxu0
    %1423 = vmatpush.bf16.msra.mxu0 %v1041
    %1424 = vmatpush.bf16.msra.mxu0 %v1037
    %1425 = vmatpush.bf16.msra.mxu0 %v1033
    %1426 = vmatpush.bf16.msra.mxu0 %v1029
    %1427 = vmatpush.bf16.msra.mxu0 %v1025
    %1428 = vmatpush.bf16.msra.mxu0 %v1021
    %1429 = vmatpush.bf16.msra.mxu0 %v1017
    %1430 = vmatpush.bf16.msra.mxu0 %v1013
    %1431 = vmatmul.bf16.gmra.mxu0 %v87
    %v1432 = vpop.f32.mrf.mxu0
    %v1433 = vadd.f32 %v1420, %v1432
    %v1434 = vpop.f32.mrf.mxu0
    %1435 = vdwg.mxu0
    %1436 = vmatpush.bf16.msra.mxu0 %v1073
    %1437 = vmatpush.bf16.msra.mxu0 %v1069
    %1438 = vmatpush.bf16.msra.mxu0 %v1065
    %1439 = vmatpush.bf16.msra.mxu0 %v1061
    %1440 = vmatpush.bf16.msra.mxu0 %v1057
    %1441 = vmatpush.bf16.msra.mxu0 %v1053
    %1442 = vmatpush.bf16.msra.mxu0 %v1049
    %1443 = vmatpush.bf16.msra.mxu0 %v1045
    %1444 = vmatmul.bf16.gmra.mxu0 %v88
    %v1445 = vpop.f32.mrf.mxu0
    %v1446 = vadd.f32 %v1433, %v1445
    %v1447 = vpop.f32.mrf.mxu0
    %1448 = vdwg.mxu0
    %1449 = vmatpush.bf16.msra.mxu0 0
    %1450 = vmatpush.bf16.msra.mxu0 0
    %1451 = vmatpush.bf16.msra.mxu0 0
    %1452 = vmatpush.bf16.msra.mxu0 0
    %1453 = vmatpush.bf16.msra.mxu0 0
    %1454 = vmatpush.bf16.msra.mxu0 0
    %1455 = vmatpush.bf16.msra.mxu0 0
    %1456 = vmatpush.bf16.msra.mxu0 %v1077
    %1457 = vmatmul.bf16.gmra.mxu0 %v1278
    %v1458 = vpop.f32.mrf.mxu0
    %v1459 = vadd.f32 %v1446, %v1458
    %v1460 = vpop.f32.mrf.mxu0
    %1461 = vdwg.mxu0
    %1462 = vmatpush.bf16.msra.mxu0 %v914
    %1463 = vmatpush.bf16.msra.mxu0 %v910
    %1464 = vmatpush.bf16.msra.mxu0 %v906
    %1465 = vmatpush.bf16.msra.mxu0 %v902
    %1466 = vmatpush.bf16.msra.mxu0 %v898
    %1467 = vmatpush.bf16.msra.mxu0 %v894
    %1468 = vmatpush.bf16.msra.mxu0 %v890
    %1469 = vmatpush.bf16.msra.mxu0 %v886
    %1470 = vmatmul.bf16.gmra.mxu0 %v83
    %v1471 = vpop.f32.mrf.mxu0
    %v1472 = vadd.f32 %v290, %v1471
    %v1473 = vpop.f32.mrf.mxu0
    %1474 = vdwg.mxu0
    %1475 = vmatpush.bf16.msra.mxu0 %v946
    %1476 = vmatpush.bf16.msra.mxu0 %v942
    %1477 = vmatpush.bf16.msra.mxu0 %v938
    %1478 = vmatpush.bf16.msra.mxu0 %v934
    %1479 = vmatpush.bf16.msra.mxu0 %v930
    %1480 = vmatpush.bf16.msra.mxu0 %v926
    %1481 = vmatpush.bf16.msra.mxu0 %v922
    %1482 = vmatpush.bf16.msra.mxu0 %v918
    %1483 = vmatmul.bf16.gmra.mxu0 %v84
    %v1484 = vpop.f32.mrf.mxu0
    %v1485 = vadd.f32 %v1472, %v1484
    %v1486 = vpop.f32.mrf.mxu0
    %1487 = vdwg.mxu0
    %1488 = vmatpush.bf16.msra.mxu0 %v978
    %1489 = vmatpush.bf16.msra.mxu0 %v974
    %1490 = vmatpush.bf16.msra.mxu0 %v970
    %1491 = vmatpush.bf16.msra.mxu0 %v966
    %1492 = vmatpush.bf16.msra.mxu0 %v962
    %1493 = vmatpush.bf16.msra.mxu0 %v958
    %1494 = vmatpush.bf16.msra.mxu0 %v954
    %1495 = vmatpush.bf16.msra.mxu0 %v950
    %1496 = vmatmul.bf16.gmra.mxu0 %v85
    %v1497 = vpop.f32.mrf.mxu0
    %v1498 = vadd.f32 %v1485, %v1497
    %v1499 = vpop.f32.mrf.mxu0
    %1500 = vdwg.mxu0
    %1501 = vmatpush.bf16.msra.mxu0 %v1010
    %1502 = vmatpush.bf16.msra.mxu0 %v1006
    %1503 = vmatpush.bf16.msra.mxu0 %v1002
    %1504 = vmatpush.bf16.msra.mxu0 %v998
    %1505 = vmatpush.bf16.msra.mxu0 %v994
    %1506 = vmatpush.bf16.msra.mxu0 %v990
    %1507 = vmatpush.bf16.msra.mxu0 %v986
    %1508 = vmatpush.bf16.msra.mxu0 %v982
    %1509 = vmatmul.bf16.gmra.mxu0 %v86
    %v1510 = vpop.f32.mrf.mxu0
    %v1511 = vadd.f32 %v1498, %v1510
    %v1512 = vpop.f32.mrf.mxu0
    %1513 = vdwg.mxu0
    %1514 = vmatpush.bf16.msra.mxu0 %v1042
    %1515 = vmatpush.bf16.msra.mxu0 %v1038
    %1516 = vmatpush.bf16.msra.mxu0 %v1034
    %1517 = vmatpush.bf16.msra.mxu0 %v1030
    %1518 = vmatpush.bf16.msra.mxu0 %v1026
    %1519 = vmatpush.bf16.msra.mxu0 %v1022
    %1520 = vmatpush.bf16.msra.mxu0 %v1018
    %1521 = vmatpush.bf16.msra.mxu0 %v1014
    %1522 = vmatmul.bf16.gmra.mxu0 %v87
    %v1523 = vpop.f32.mrf.mxu0
    %v1524 = vadd.f32 %v1511, %v1523
    %v1525 = vpop.f32.mrf.mxu0
    %1526 = vdwg.mxu0
    %1527 = vmatpush.bf16.msra.mxu0 %v1074
    %1528 = vmatpush.bf16.msra.mxu0 %v1070
    %1529 = vmatpush.bf16.msra.mxu0 %v1066
    %1530 = vmatpush.bf16.msra.mxu0 %v1062
    %1531 = vmatpush.bf16.msra.mxu0 %v1058
    %1532 = vmatpush.bf16.msra.mxu0 %v1054
    %1533 = vmatpush.bf16.msra.mxu0 %v1050
    %1534 = vmatpush.bf16.msra.mxu0 %v1046
    %1535 = vmatmul.bf16.gmra.mxu0 %v88
    %v1536 = vpop.f32.mrf.mxu0
    %v1537 = vadd.f32 %v1524, %v1536
    %v1538 = vpop.f32.mrf.mxu0
    %1539 = vdwg.mxu0
    %1540 = vmatpush.bf16.msra.mxu0 0
    %1541 = vmatpush.bf16.msra.mxu0 0
    %1542 = vmatpush.bf16.msra.mxu0 0
    %1543 = vmatpush.bf16.msra.mxu0 0
    %1544 = vmatpush.bf16.msra.mxu0 0
    %1545 = vmatpush.bf16.msra.mxu0 0
    %1546 = vmatpush.bf16.msra.mxu0 0
    %1547 = vmatpush.bf16.msra.mxu0 %v1078
    %1548 = vmatmul.bf16.gmra.mxu0 %v1278
    %v1549 = vpop.f32.mrf.mxu0
    %v1550 = vadd.f32 %v1537, %v1549
    %v1551 = vpop.f32.mrf.mxu0
    %1552 = vdwg.mxu0
    %1553 = vmatpush.bf16.msra.mxu0 %v915
    %1554 = vmatpush.bf16.msra.mxu0 %v911
    %1555 = vmatpush.bf16.msra.mxu0 %v907
    %1556 = vmatpush.bf16.msra.mxu0 %v903
    %1557 = vmatpush.bf16.msra.mxu0 %v899
    %1558 = vmatpush.bf16.msra.mxu0 %v895
    %1559 = vmatpush.bf16.msra.mxu0 %v891
    %1560 = vmatpush.bf16.msra.mxu0 %v887
    %1561 = vmatmul.bf16.gmra.mxu0 %v83
    %v1562 = vpop.f32.mrf.mxu0
    %v1563 = vadd.f32 %v291, %v1562
    %v1564 = vpop.f32.mrf.mxu0
    %1565 = vdwg.mxu0
    %1566 = vmatpush.bf16.msra.mxu0 %v947
    %1567 = vmatpush.bf16.msra.mxu0 %v943
    %1568 = vmatpush.bf16.msra.mxu0 %v939
    %1569 = vmatpush.bf16.msra.mxu0 %v935
    %1570 = vmatpush.bf16.msra.mxu0 %v931
    %1571 = vmatpush.bf16.msra.mxu0 %v927
    %1572 = vmatpush.bf16.msra.mxu0 %v923
    %1573 = vmatpush.bf16.msra.mxu0 %v919
    %1574 = vmatmul.bf16.gmra.mxu0 %v84
    %v1575 = vpop.f32.mrf.mxu0
    %v1576 = vadd.f32 %v1563, %v1575
    %v1577 = vpop.f32.mrf.mxu0
    %1578 = vdwg.mxu0
    %1579 = vmatpush.bf16.msra.mxu0 %v979
    %1580 = vmatpush.bf16.msra.mxu0 %v975
    %1581 = vmatpush.bf16.msra.mxu0 %v971
    %1582 = vmatpush.bf16.msra.mxu0 %v967
    %1583 = vmatpush.bf16.msra.mxu0 %v963
    %1584 = vmatpush.bf16.msra.mxu0 %v959
    %1585 = vmatpush.bf16.msra.mxu0 %v955
    %1586 = vmatpush.bf16.msra.mxu0 %v951
    %1587 = vmatmul.bf16.gmra.mxu0 %v85
    %v1588 = vpop.f32.mrf.mxu0
    %v1589 = vadd.f32 %v1576, %v1588
    %v1590 = vpop.f32.mrf.mxu0
    %1591 = vdwg.mxu0
    %1592 = vmatpush.bf16.msra.mxu0 %v1011
    %1593 = vmatpush.bf16.msra.mxu0 %v1007
    %1594 = vmatpush.bf16.msra.mxu0 %v1003
    %1595 = vmatpush.bf16.msra.mxu0 %v999
    %1596 = vmatpush.bf16.msra.mxu0 %v995
    %1597 = vmatpush.bf16.msra.mxu0 %v991
    %1598 = vmatpush.bf16.msra.mxu0 %v987
    %1599 = vmatpush.bf16.msra.mxu0 %v983
    %1600 = vmatmul.bf16.gmra.mxu0 %v86
    %v1601 = vpop.f32.mrf.mxu0
    %v1602 = vadd.f32 %v1589, %v1601
    %v1603 = vpop.f32.mrf.mxu0
    %1604 = vdwg.mxu0
    %1605 = vmatpush.bf16.msra.mxu0 %v1043
    %1606 = vmatpush.bf16.msra.mxu0 %v1039
    %1607 = vmatpush.bf16.msra.mxu0 %v1035
    %1608 = vmatpush.bf16.msra.mxu0 %v1031
    %1609 = vmatpush.bf16.msra.mxu0 %v1027
    %1610 = vmatpush.bf16.msra.mxu0 %v1023
    %1611 = vmatpush.bf16.msra.mxu0 %v1019
    %1612 = vmatpush.bf16.msra.mxu0 %v1015
    %1613 = vmatmul.bf16.gmra.mxu0 %v87
    %v1614 = vpop.f32.mrf.mxu0
    %v1615 = vadd.f32 %v1602, %v1614
    %v1616 = vpop.f32.mrf.mxu0
    %1617 = vdwg.mxu0
    %1618 = vmatpush.bf16.msra.mxu0 %v1075
    %1619 = vmatpush.bf16.msra.mxu0 %v1071
    %1620 = vmatpush.bf16.msra.mxu0 %v1067
    %1621 = vmatpush.bf16.msra.mxu0 %v1063
    %1622 = vmatpush.bf16.msra.mxu0 %v1059
    %1623 = vmatpush.bf16.msra.mxu0 %v1055
    %1624 = vmatpush.bf16.msra.mxu0 %v1051
    %1625 = vmatpush.bf16.msra.mxu0 %v1047
    %1626 = vmatmul.bf16.gmra.mxu0 %v88
    %v1627 = vpop.f32.mrf.mxu0
    %v1628 = vadd.f32 %v1615, %v1627
    %v1629 = vpop.f32.mrf.mxu0
    %1630 = vdwg.mxu0
    %1631 = vmatpush.bf16.msra.mxu0 0
    %1632 = vmatpush.bf16.msra.mxu0 0
    %1633 = vmatpush.bf16.msra.mxu0 0
    %1634 = vmatpush.bf16.msra.mxu0 0
    %1635 = vmatpush.bf16.msra.mxu0 0
    %1636 = vmatpush.bf16.msra.mxu0 0
    %1637 = vmatpush.bf16.msra.mxu0 0
    %1638 = vmatpush.bf16.msra.mxu0 %v1079
    %1639 = vmatmul.bf16.gmra.mxu0 %v1278
    %v1640 = vpop.f32.mrf.mxu0
    %v1641 = vadd.f32 %v1628, %v1640
    %v1642 = vpop.f32.mrf.mxu0
    %1643 = vdwg.mxu0
    %v1644 = vmax.f32 %v1368, 0.0
    %v1645 = vmax.f32 %v1459, 0.0
    %v1646 = vmax.f32 %v1550, 0.0
    %v1647 = vmax.f32 %v1641, 0.0
    %v1648 = vpack.c.bf16 %v1644, %v1644
    %v1649 = vpack.c.bf16 %v1645, %v1645
    %v1650 = vpack.c.bf16 %v1646, %v1646
    %v1651 = vpack.c.bf16 %v1647, %v1647
    %v1652 = vld [vmem:[%s3] sm:$0xf]
    %v1653 = vld [vmem:[%s3 + $0x4] sm:$0xf]
    %v1654 = vld [vmem:[%s3 + $0x8] sm:$0xf]
    %v1655 = vld [vmem:[%s3 + $0xc] sm:$0xf]
    %v1656 = vld [vmem:[%s3 + $0x10] sm:$0xf]
    %v1657 = vld [vmem:[%s3 + $0x14] sm:$0xf]
    %v1658 = vld [vmem:[%s3 + $0x18] sm:$0xf]
    %v1659 = vld [vmem:[%s3 + $0x1c] sm:$0xf]
    %v1660 = vld [vmem:[%s3 + $0x20] sm:$0xf]
    %v1661 = vld [vmem:[%s3 + $0x24] sm:$0xf]
    %v1662 = vld [vmem:[%s3 + $0x28] sm:$0xf]
    %v1663 = vld [vmem:[%s3 + $0x2c] sm:$0xf]
    %v1664 = vld [vmem:[%s3 + $0x30] sm:$0xf]
    %v1665 = vld [vmem:[%s3 + $0x34] sm:$0xf]
    %v1666 = vld [vmem:[%s3 + $0x38] sm:$0xf]
    %v1667 = vld [vmem:[%s3 + $0x3c] sm:$0xf]
    %v1668 = vld [vmem:[%s3 + $0x40] sm:$0xf]
    %v1669 = vld [vmem:[%s3 + $0x44] sm:$0xf]
    %v1670 = vld [vmem:[%s3 + $0x48] sm:$0xf]
    %v1671 = vld [vmem:[%s3 + $0x4c] sm:$0xf]
    %v1672 = vld [vmem:[%s3 + $0x50] sm:$0xf]
    %v1673 = vld [vmem:[%s3 + $0x54] sm:$0xf]
    %v1674 = vld [vmem:[%s3 + $0x58] sm:$0xf]
    %v1675 = vld [vmem:[%s3 + $0x5c] sm:$0xf]
    %v1676 = vld [vmem:[%s3 + $0x60] sm:$0xf]
    %v1677 = vld [vmem:[%s3 + $0x64] sm:$0xf]
    %v1678 = vld [vmem:[%s3 + $0x68] sm:$0xf]
    %v1679 = vld [vmem:[%s3 + $0x6c] sm:$0xf]
    %v1680 = vld [vmem:[%s3 + $0x70] sm:$0xf]
    %v1681 = vld [vmem:[%s3 + $0x74] sm:$0xf]
    %v1682 = vld [vmem:[%s3 + $0x78] sm:$0xf]
    %v1683 = vld [vmem:[%s3 + $0x7c] sm:$0xf]
    %v1684 = vld [vmem:[%s3 + $0x80] sm:$0xf]
    %v1685 = vld [vmem:[%s3 + $0x84] sm:$0xf]
    %v1686 = vld [vmem:[%s3 + $0x88] sm:$0xf]
    %v1687 = vld [vmem:[%s3 + $0x8c] sm:$0xf]
    %v1688 = vld [vmem:[%s3 + $0x90] sm:$0xf]
    %v1689 = vld [vmem:[%s3 + $0x94] sm:$0xf]
    %v1690 = vld [vmem:[%s3 + $0x98] sm:$0xf]
    %v1691 = vld [vmem:[%s3 + $0x9c] sm:$0xf]
    %v1692 = vld [vmem:[%s3 + $0xa0] sm:$0xf]
    %v1693 = vld [vmem:[%s3 + $0xa4] sm:$0xf]
    %v1694 = vld [vmem:[%s3 + $0xa8] sm:$0xf]
    %v1695 = vld [vmem:[%s3 + $0xac] sm:$0xf]
    %v1696 = vld [vmem:[%s3 + $0xb0] sm:$0xf]
    %v1697 = vld [vmem:[%s3 + $0xb4] sm:$0xf]
    %v1698 = vld [vmem:[%s3 + $0xb8] sm:$0xf]
    %v1699 = vld [vmem:[%s3 + $0xbc] sm:$0xf]
    %v1700 = vld [vmem:[%s3 + $0xc0] sm:$0xf]
    %v1701 = vld [vmem:[%s3 + $0xc4] sm:$0xf]
    %v1702 = vld [vmem:[%s3 + $0xc8] sm:$0xf]
    %v1703 = vld [vmem:[%s3 + $0xcc] sm:$0xf]
    %v1704 = vld [vmem:[%s3 + $0xd0] sm:$0xf]
    %v1705 = vld [vmem:[%s3 + $0xd4] sm:$0xf]
    %v1706 = vld [vmem:[%s3 + $0xd8] sm:$0xf]
    %v1707 = vld [vmem:[%s3 + $0xdc] sm:$0xf]
    %v1708 = vld [vmem:[%s3 + $0xe0] sm:$0xf]
    %v1709 = vld [vmem:[%s3 + $0xe4] sm:$0xf]
    %v1710 = vld [vmem:[%s3 + $0xe8] sm:$0xf]
    %v1711 = vld [vmem:[%s3 + $0xec] sm:$0xf]
    %v1712 = vld [vmem:[%s3 + $0xf0] sm:$0xf]
    %v1713 = vld [vmem:[%s3 + $0xf4] sm:$0xf]
    %v1714 = vld [vmem:[%s3 + $0xf8] sm:$0xf]
    %v1715 = vld [vmem:[%s3 + $0xfc] sm:$0xf]
    %s1716 = sld [smem:[#allocation2]]
    %v1717 = vstv %s1716
    %v1782 = vunpack.c.l.b16 %v1652
    %v1783 = vunpack.c.l.b16 %v1653
    %v1784 = vunpack.c.l.b16 %v1654
    %v1785 = vunpack.c.l.b16 %v1655
    %v1786 = vunpack.c.l.b16 %v1656
    %v1787 = vunpack.c.l.b16 %v1657
    %v1788 = vunpack.c.l.b16 %v1658
    %v1789 = vunpack.c.l.b16 %v1659
    %v1790 = vunpack.c.l.b16 %v1660
    %v1791 = vunpack.c.l.b16 %v1661
    %v1792 = vunpack.c.l.b16 %v1662
    %v1793 = vunpack.c.l.b16 %v1663
    %v1794 = vunpack.c.l.b16 %v1664
    %v1795 = vunpack.c.l.b16 %v1665
    %v1796 = vunpack.c.l.b16 %v1666
    %v1797 = vunpack.c.l.b16 %v1667
    %v1798 = vunpack.c.l.b16 %v1668
    %v1799 = vunpack.c.l.b16 %v1669
    %v1800 = vunpack.c.l.b16 %v1670
    %v1801 = vunpack.c.l.b16 %v1671
    %v1802 = vunpack.c.l.b16 %v1672
    %v1803 = vunpack.c.l.b16 %v1673
    %v1804 = vunpack.c.l.b16 %v1674
    %v1805 = vunpack.c.l.b16 %v1675
    %v1806 = vunpack.c.l.b16 %v1676
    %v1807 = vunpack.c.l.b16 %v1677
    %v1808 = vunpack.c.l.b16 %v1678
    %v1809 = vunpack.c.l.b16 %v1679
    %v1810 = vunpack.c.l.b16 %v1680
    %v1811 = vunpack.c.l.b16 %v1681
    %v1812 = vunpack.c.l.b16 %v1682
    %v1813 = vunpack.c.l.b16 %v1683
    %v1814 = vunpack.c.l.b16 %v1684
    %v1815 = vunpack.c.l.b16 %v1685
    %v1816 = vunpack.c.l.b16 %v1686
    %v1817 = vunpack.c.l.b16 %v1687
    %v1818 = vunpack.c.l.b16 %v1688
    %v1819 = vunpack.c.l.b16 %v1689
    %v1820 = vunpack.c.l.b16 %v1690
    %v1821 = vunpack.c.l.b16 %v1691
    %v1822 = vunpack.c.l.b16 %v1692
    %v1823 = vunpack.c.l.b16 %v1693
    %v1824 = vunpack.c.l.b16 %v1694
    %v1825 = vunpack.c.l.b16 %v1695
    %v1826 = vunpack.c.l.b16 %v1696
    %v1827 = vunpack.c.l.b16 %v1697
    %v1828 = vunpack.c.l.b16 %v1698
    %v1829 = vunpack.c.l.b16 %v1699
    %v1830 = vunpack.c.l.b16 %v1700
    %v1831 = vunpack.c.l.b16 %v1701
    %v1832 = vunpack.c.l.b16 %v1702
    %v1833 = vunpack.c.l.b16 %v1703
    %v1834 = vunpack.c.l.b16 %v1704
    %v1835 = vunpack.c.l.b16 %v1705
    %v1836 = vunpack.c.l.b16 %v1706
    %v1837 = vunpack.c.l.b16 %v1707
    %v1838 = vunpack.c.l.b16 %v1708
    %v1839 = vunpack.c.l.b16 %v1709
    %v1840 = vunpack.c.l.b16 %v1710
    %v1841 = vunpack.c.l.b16 %v1711
    %v1842 = vunpack.c.l.b16 %v1712
    %v1843 = vunpack.c.l.b16 %v1713
    %v1844 = vunpack.c.l.b16 %v1714
    %v1845 = vunpack.c.l.b16 %v1715
    %v1846 = vpack.c.b16 %v1783, %v1782
    %v1847 = vpack.c.b16 %v1785, %v1784
    %v1848 = vpack.c.b16 %v1787, %v1786
    %v1849 = vpack.c.b16 %v1789, %v1788
    %v1850 = vpack.c.b16 %v1791, %v1790
    %v1851 = vpack.c.b16 %v1793, %v1792
    %v1852 = vpack.c.b16 %v1795, %v1794
    %v1853 = vpack.c.b16 %v1797, %v1796
    %v1854 = vpack.c.b16 %v1799, %v1798
    %v1855 = vpack.c.b16 %v1801, %v1800
    %v1856 = vpack.c.b16 %v1803, %v1802
    %v1857 = vpack.c.b16 %v1805, %v1804
    %v1858 = vpack.c.b16 %v1807, %v1806
    %v1859 = vpack.c.b16 %v1809, %v1808
    %v1860 = vpack.c.b16 %v1811, %v1810
    %v1861 = vpack.c.b16 %v1813, %v1812
    %v1862 = vpack.c.b16 %v1815, %v1814
    %v1863 = vpack.c.b16 %v1817, %v1816
    %v1864 = vpack.c.b16 %v1819, %v1818
    %v1865 = vpack.c.b16 %v1821, %v1820
    %v1866 = vpack.c.b16 %v1823, %v1822
    %v1867 = vpack.c.b16 %v1825, %v1824
    %v1868 = vpack.c.b16 %v1827, %v1826
    %v1869 = vpack.c.b16 %v1829, %v1828
    %v1870 = vpack.c.b16 %v1831, %v1830
    %v1871 = vpack.c.b16 %v1833, %v1832
    %v1872 = vpack.c.b16 %v1835, %v1834
    %v1873 = vpack.c.b16 %v1837, %v1836
    %v1874 = vpack.c.b16 %v1839, %v1838
    %v1875 = vpack.c.b16 %v1841, %v1840
    %v1876 = vpack.c.b16 %v1843, %v1842
    %v1877 = vpack.c.b16 %v1845, %v1844
    %1910 = vmatpush.bf16.msra.mxu0 %v1853
    %1911 = vmatpush.bf16.msra.mxu0 %v1852
    %1912 = vmatpush.bf16.msra.mxu0 %v1851
    %1913 = vmatpush.bf16.msra.mxu0 %v1850
    %1914 = vmatpush.bf16.msra.mxu0 %v1849
    %1915 = vmatpush.bf16.msra.mxu0 %v1848
    %1916 = vmatpush.bf16.msra.mxu0 %v1847
    %1917 = vmatpush.bf16.msra.mxu0 %v1846
    %1918 = vmatmul.bf16.gmra.mxu0 %v1648
    %v1919 = vpop.f32.mrf.mxu0
    %v1920 = vadd.f32 %v1717, %v1919
    %v1921 = vpop.f32.mrf.mxu0
    %1922 = vdwg.mxu0
    %1923 = vmatpush.bf16.msra.mxu0 %v1861
    %1924 = vmatpush.bf16.msra.mxu0 %v1860
    %1925 = vmatpush.bf16.msra.mxu0 %v1859
    %1926 = vmatpush.bf16.msra.mxu0 %v1858
    %1927 = vmatpush.bf16.msra.mxu0 %v1857
    %1928 = vmatpush.bf16.msra.mxu0 %v1856
    %1929 = vmatpush.bf16.msra.mxu0 %v1855
    %1930 = vmatpush.bf16.msra.mxu0 %v1854
    %1931 = vmatmul.bf16.gmra.mxu0 %v1649
    %v1932 = vpop.f32.mrf.mxu0
    %v1933 = vadd.f32 %v1920, %v1932
    %v1934 = vpop.f32.mrf.mxu0
    %1935 = vdwg.mxu0
    %1936 = vmatpush.bf16.msra.mxu0 %v1869
    %1937 = vmatpush.bf16.msra.mxu0 %v1868
    %1938 = vmatpush.bf16.msra.mxu0 %v1867
    %1939 = vmatpush.bf16.msra.mxu0 %v1866
    %1940 = vmatpush.bf16.msra.mxu0 %v1865
    %1941 = vmatpush.bf16.msra.mxu0 %v1864
    %1942 = vmatpush.bf16.msra.mxu0 %v1863
    %1943 = vmatpush.bf16.msra.mxu0 %v1862
    %1944 = vmatmul.bf16.gmra.mxu0 %v1650
    %v1945 = vpop.f32.mrf.mxu0
    %v1946 = vadd.f32 %v1933, %v1945
    %v1947 = vpop.f32.mrf.mxu0
    %1948 = vdwg.mxu0
    %1949 = vmatpush.bf16.msra.mxu0 %v1877
    %1950 = vmatpush.bf16.msra.mxu0 %v1876
    %1951 = vmatpush.bf16.msra.mxu0 %v1875
    %1952 = vmatpush.bf16.msra.mxu0 %v1874
    %1953 = vmatpush.bf16.msra.mxu0 %v1873
    %1954 = vmatpush.bf16.msra.mxu0 %v1872
    %1955 = vmatpush.bf16.msra.mxu0 %v1871
    %1956 = vmatpush.bf16.msra.mxu0 %v1870
    %1957 = vmatmul.bf16.gmra.mxu0 %v1651
    %v1958 = vpop.f32.mrf.mxu0
    %v1959 = vadd.f32 %v1946, %v1958
    %v1960 = vpop.f32.mrf.mxu0
    %1961 = vdwg.mxu0
    %v1962 = vsub.f32 0.0, %v1959
    %v1963 = vmul.f32 %v1962, 1.442695
    %v1964 = vpow.pop %v1963
    %v1965 = vadd.f32 %v1964, 1.0
    %v1966 = vrcp.pop %v1965
    %vm1967 = vcmask 7168
    %1968 = vst.msk [vmem:[#allocation5] sm:$0xff] %vm1967, %v1966
    // Predicated region
    $region26: #{discriminator_forward.1} parent=1 // pred_check
      _
    $region27: #{discriminator_forward.1} parent=1 // pred_check_branch
      %1970 = sbr.rel (0) target = $region29
    $region28: #{discriminator_forward.1} parent=1 // pred_region
      // Predicated region
      $region30: #{discriminator_forward.1} parent=28 // pred_check
        _
      $region31: #{discriminator_forward.1} parent=28 // pred_check_branch
        %1972 = sbr.rel (0) target = $region33
      $region32: #{discriminator_forward.1} parent=28 // pred_region
        // Predicated region
        $region34: #{discriminator_forward.1} parent=32 // pred_check
          _
        $region35: #{discriminator_forward.1} parent=32 // pred_check_branch
          %1974 = sbr.rel target = $region37
        $region36: #{discriminator_forward.1} parent=32 // pred_region
          // Predicated region
          $region49: #{discriminator_forward.1} parent=36 // pred_check
            _
          $region50: #{discriminator_forward.1} parent=36 // pred_check_branch
            %1990 = sbr.rel (0) target = $region52
          $region51: #{discriminator_forward.1} parent=36 // pred_region
            %s1992 = ssub.s32 16, 1
            loop: start=0, step=1, limit=1
            $region53: #{discriminator_forward.1} parent=51 // loop_pre_header
              _
            $region54: #{discriminator_forward.1} parent=51 // loop_header
              %s1994 = sphi 0, %s1998
              %p1995 = scmp.ge.s32.totalorder %s1994, 1
              %s1999 = sphi [#allocation5], [#allocation5]
              %s2000 = sphi %s5, %s5
            $region55: #{discriminator_forward.1} parent=51 // loop_header_branch
              %1997 = sbr.rel (%p1995) target = $region59
            $region56: #{discriminator_forward.1} parent=51 // loop_body
              %v2001 = vld [vmem:[%s1999] sm:%s1992]
              %2002 = vst [vmem:[%s2000] sm:%s1992] %v2001
            $region57: #{discriminator_forward.1} parent=51 // loop_footer
              %s1998 = sadd.s32 1, %s1994
            $region58: #{discriminator_forward.1} parent=51 // loop_footer_branch
              %1993 = sbr.rel target = $region54
            $region59: #{discriminator_forward.1} parent=51 // loop_exit
              _
          $region52: #{discriminator_forward.1} parent=36 // pred_fallthru
            _
        $region37: #{discriminator_forward.1} parent=32 // pred_fallthru
          _
        // Predicated region
        $region38: #{discriminator_forward.1} parent=32 // pred_check
          _
        $region39: #{discriminator_forward.1} parent=32 // pred_check_branch
          %1976 = sbr.rel (0) target = $region41
        $region40: #{discriminator_forward.1} parent=32 // pred_region
          %s1978 = ssub.s32 16, 1
          loop: start=0, step=1, limit=1
          $region42: #{discriminator_forward.1} parent=40 // loop_pre_header
            _
          $region43: #{discriminator_forward.1} parent=40 // loop_header
            %s1980 = sphi 0, %s1984
            %p1981 = scmp.ge.s32.totalorder %s1980, 1
            %s1985 = sphi [#allocation5], [#allocation5]
            %s1986 = sphi %s5, %s5
          $region44: #{discriminator_forward.1} parent=40 // loop_header_branch
            %1983 = sbr.rel (%p1981) target = $region48
          $region45: #{discriminator_forward.1} parent=40 // loop_body
            %v1987 = vld [vmem:[%s1985] sm:%s1978]
            %1988 = vst [vmem:[%s1986] sm:%s1978] %v1987
          $region46: #{discriminator_forward.1} parent=40 // loop_footer
            %s1984 = sadd.s32 1, %s1980
          $region47: #{discriminator_forward.1} parent=40 // loop_footer_branch
            %1979 = sbr.rel target = $region43
          $region48: #{discriminator_forward.1} parent=40 // loop_exit
            _
        $region41: #{discriminator_forward.1} parent=32 // pred_fallthru
          _
      $region33: #{discriminator_forward.1} parent=28 // pred_fallthru
        _
      %2003 = vnop
    $region29: #{discriminator_forward.1} parent=1 // pred_fallthru
      _
    // Predicated region
    $region60: #{discriminator_forward.1} parent=1 // pred_check
      _
    $region61: #{discriminator_forward.1} parent=1 // pred_check_branch
      %2005 = sbr.rel (0) target = $region63
    $region62: #{discriminator_forward.1} parent=1 // pred_region
      _
    $region63: #{discriminator_forward.1} parent=1 // pred_fallthru
      _
    %2006 = vsyncpa [#allocation4], 1

</llo_original>
